<compile_context>
chip_gen: v5e
topology: v5e:2x2
jax: 0.10.0
libtpu: 0.0.40
codegen_flags: <defaults>
</compile_context>

<pallas_src>
import functools
import math

import jax
import jax.numpy as jnp
from jax.experimental import pallas as pl
from jax.experimental.pallas import tpu as pltpu


# ---------------------------------------------------------------------------
# Fast path: table resident in VMEM, gather via one-hot MXU matmul.
# ---------------------------------------------------------------------------
def _embedding_vmem_kernel(ids_ref, table_ref, out_ref, *, scale):
    ids = ids_ref[...]                                        # (tb, 1) int32
    tb = ids.shape[0]
    V = table_ref.shape[0]
    col = jax.lax.broadcasted_iota(jnp.int32, (tb, V), 1)     # (tb, V)
    one_hot = (col == ids).astype(table_ref.dtype)            # exact 0/1 rows
    acc = jnp.dot(one_hot, table_ref[...],
                  precision=jax.lax.Precision.HIGHEST,
                  preferred_element_type=jnp.float32)         # (tb, D)
    out_ref[...] = (acc * scale).astype(out_ref.dtype)


def _embedding_vmem_call(flat_ids, weight, tb, scale):
    n_pad = flat_ids.shape[0]
    V, D = weight.shape
    nblk = n_pad // tb
    itemsize = jnp.dtype(weight.dtype).itemsize
    needed = (V * D * itemsize            # resident table
              + 2 * tb * D * itemsize     # pipelined output blocks
              + 2 * tb * 4                # pipelined id blocks
              + tb * V * 4)               # one-hot intermediate
    vmem_limit = int(max(32 << 20, min(needed + (4 << 20), 96 << 20)))

    kernel = functools.partial(_embedding_vmem_kernel, scale=scale)
    return pl.pallas_call(
        kernel,
        out_shape=jax.ShapeDtypeStruct((n_pad, D), weight.dtype),
        grid=(nblk,),
        in_specs=[
            pl.BlockSpec((tb, 1), lambda i: (i, 0)),          # token ids
            pl.BlockSpec((V, D), lambda i: (0, 0)),           # resident table
        ],
        out_specs=pl.BlockSpec((tb, D), lambda i: (i, 0)),
        compiler_params=pltpu.CompilerParams(
            dimension_semantics=("parallel",),
            vmem_limit_bytes=vmem_limit,
        ),
    )(flat_ids.reshape(n_pad, 1), weight)


# ---------------------------------------------------------------------------
# Large-vocab path: manual double-buffered HBM row gather.
# ---------------------------------------------------------------------------
def _embedding_hbm_kernel(ids_ref, table_hbm, out_ref, buf, sems, *, tb, scale):
    i = pl.program_id(0)
    nblk = pl.num_programs(0)

    def issue(block, slot):
        # tb independent row DMAs, all signaling the SAME per-slot semaphore.
        def body(t, carry):
            row = ids_ref[block * tb + t]
            pltpu.make_async_copy(
                table_hbm.at[pl.ds(row, 1), :],
                buf.at[slot, pl.ds(t, 1), :],
                sems.at[slot],
            ).start()
            return carry
        jax.lax.fori_loop(0, tb, body, 0)

    # Prime the pipeline: fetch block 0 into slot 0.
    @pl.when(i == 0)
    def _():
        issue(0, 0)

    slot = i % 2

    # Prefetch block i+1 into the other slot before waiting on this one
    # (all SMEM id reads for the next block happen ahead of the wait).
    @pl.when(i + 1 < nblk)
    def _():
        issue(i + 1, 1 - slot)

    # Single aggregate wait: byte count (tb, D) == sum of the tb row copies.
    pltpu.make_async_copy(
        table_hbm.at[pl.ds(0, tb), :],    # dummy src (shape only; tb <= V)
        buf.at[slot],
        sems.at[slot],
    ).wait()

    out_ref[...] = (buf[slot] * scale).astype(out_ref.dtype)


def _embedding_hbm_call(flat_ids, weight, tb, scale):
    n_pad = flat_ids.shape[0]
    V, D = weight.shape
    nblk = n_pad // tb
    itemsize = jnp.dtype(weight.dtype).itemsize
    needed = (2 * tb * D * itemsize       # gather double buffer
              + 2 * tb * D * itemsize)    # pipelined output blocks
    vmem_limit = int(max(32 << 20, min(needed + (4 << 20), 96 << 20)))

    kernel = functools.partial(_embedding_hbm_kernel, tb=tb, scale=scale)
    return pl.pallas_call(
        kernel,
        out_shape=jax.ShapeDtypeStruct((n_pad, D), weight.dtype),
        grid_spec=pltpu.PrefetchScalarGridSpec(
            num_scalar_prefetch=1,                         # token ids -> SMEM
            grid=(nblk,),
            in_specs=[pl.BlockSpec(memory_space=pl.ANY)],  # table stays in HBM
            out_specs=pl.BlockSpec((tb, D), lambda i, ids: (i, 0)),
            scratch_shapes=[
                pltpu.VMEM((2, tb, D), weight.dtype),      # double-buffered rows
                pltpu.SemaphoreType.DMA((2,)),             # one sem per slot
            ],
        ),
        compiler_params=pltpu.CompilerParams(
            # Cross-step double buffering carries scratch/semaphore state.
            dimension_semantics=("arbitrary",),
            vmem_limit_bytes=vmem_limit,
        ),
    )(flat_ids, weight)


# ---------------------------------------------------------------------------
# Wrapper: Embedding.forward == embedding(inputs) * sqrt(d_model)
# ---------------------------------------------------------------------------
def embedding_forward(token_ids, weight, *, tokens_per_block=128,
                      vmem_table_budget_bytes=4 << 20,
                      max_prefetch_tokens=1 << 15,
                      force_hbm_gather=False):
    """token_ids: (B, T) int32; weight: (V, D) (row pad_id is zero, exactly as
    nn.Embedding(padding_idx=pad_id) initializes it). Returns (B, T, D)."""
    B, T = token_ids.shape
    V, D = weight.shape
    scale = math.sqrt(D)
    n = B * T
    flat = token_ids.reshape(n).astype(jnp.int32)

    table_bytes = V * D * jnp.dtype(weight.dtype).itemsize
    use_vmem = (not force_hbm_gather) and table_bytes <= vmem_table_budget_bytes

    if use_vmem:
        tb = tokens_per_block
        n_pad = pl.cdiv(n, tb) * tb
        if n_pad != n:
            flat = jnp.concatenate([flat, jnp.zeros((n_pad - n,), jnp.int32)])
        out = _embedding_vmem_call(flat, weight, tb, scale)
    else:
        # Keep tb a multiple of 8 and <= V (the aggregate-wait descriptor
        # slices tb rows of the table for its byte count).
        tb = max(8, min(tokens_per_block, (V // 8) * 8))
        # Clamp so a bad id never becomes an out-of-range HBM DMA.
        flat = jnp.clip(flat, 0, V - 1)
        n_pad = pl.cdiv(n, tb) * tb
        if n_pad != n:
            flat = jnp.concatenate([flat, jnp.zeros((n_pad - n,), jnp.int32)])
        # Chunk calls so the scalar-prefetched id array stays small in SMEM.
        chunk = max(tb, (max_prefetch_tokens // tb) * tb)
        pieces = [_embedding_hbm_call(flat[s:s + chunk], weight, tb, scale)
                  for s in range(0, n_pad, chunk)]
        out = pieces[0] if len(pieces) == 1 else jnp.concatenate(pieces, axis=0)

    return out[:n].reshape(B, T, D)


def _reference_forward(token_ids, weight):
    """Pure-JAX reference reproducing the PyTorch module's forward."""
    V, D = weight.shape
    return jnp.take(weight, token_ids, axis=0) * math.sqrt(D)


if __name__ == "__main__":
    # Small shapes consistent with the module.
    NUM_EMBEDDINGS, D_MODEL, PAD_ID = 96, 256, 0
    B, T = 2, 24

    key = jax.random.PRNGKey(0)
    k_w, k_ids = jax.random.split(key)

    # nn.Embedding(num_embeddings, d_model, padding_idx=pad_id): pad row is zero.
    weight = jax.random.normal(k_w, (NUM_EMBEDDINGS, D_MODEL), dtype=jnp.float32)
    weight = weight.at[PAD_ID].set(0.0)

    token_ids = jax.random.randint(k_ids, (B, T), 0, NUM_EMBEDDINGS, dtype=jnp.int32)
    token_ids = token_ids.at[:, -3:].set(PAD_ID)   # trailing padding tokens

    ref = _reference_forward(token_ids, weight)

    # Default (VMEM-resident one-hot) path.
    out_vmem = jax.block_until_ready(embedding_forward(token_ids, weight))
    assert out_vmem.shape == (B, T, D_MODEL), (out_vmem.shape, (B, T, D_MODEL))
    assert jnp.allclose(out_vmem, ref, rtol=1e-5, atol=1e-5), "VMEM path mismatch"
    assert jnp.allclose(out_vmem[:, -3:, :], 0.0), "padding_idx rows must be zero"

    # Large-vocab HBM gather path (forced here for coverage/correctness).
    out_hbm = jax.block_until_ready(
        embedding_forward(token_ids, weight, force_hbm_gather=True))
    assert jnp.allclose(out_hbm, ref, rtol=1e-5, atol=1e-5), "HBM path mismatch"
    assert jnp.allclose(out_hbm[:, -3:, :], 0.0), "padding_idx rows must be zero"

    print("KERNEL_OK")
</pallas_src>

<mosaic_0001>
module attributes {stable_mosaic.version = 11 : i64} {
  func.func @_embedding_vmem_kernel(%arg0: i32, %arg1: memref<128x1xi32, #tpu.memory_space<vmem>>, %arg2: memref<96x256xf32, #tpu.memory_space<vmem>>, %arg3: memref<128x256xf32, #tpu.memory_space<vmem>>) attributes {dimension_semantics = [#tpu.dimension_semantics<parallel>], iteration_bounds = array<i64: 1>, scalar_prefetch = 0 : i64, scratch_operands = 0 : i64, tpu.core_type = #tpu.core_type<tc>, window_params = [{transform_indices = @transform_0, window_bounds = array<i64: 128, 1>}, {pipeline_mode = #tpu.pipeline_mode<synchronous>, transform_indices = @transform_1, window_bounds = array<i64: 96, 256>}, {transform_indices = @transform_2, window_bounds = array<i64: 128, 256>}]} {
    %c0 = arith.constant 0 : index
    %c0_0 = arith.constant 0 : index
    %0 = vector.load %arg1[%c0, %c0_0] : memref<128x1xi32, #tpu.memory_space<vmem>>, vector<128x1xi32>
    %1 = tpu.iota {dimensions = array<i32: 1>} : vector<128x96xi32>
    %2 = vector.broadcast %0 : vector<128x1xi32> to vector<128x96xi32>
    %3 = arith.cmpi eq, %1, %2 : vector<128x96xi32>
    %4 = arith.extui %3 : vector<128x96xi1> to vector<128x96xi32>
    %5 = arith.sitofp %4 : vector<128x96xi32> to vector<128x96xf32>
    %c0_1 = arith.constant 0 : index
    %c0_2 = arith.constant 0 : index
    %6 = vector.load %arg2[%c0_1, %c0_2] : memref<96x256xf32, #tpu.memory_space<vmem>>, vector<96x256xf32>
    %cst = arith.constant dense<0.000000e+00> : vector<128x256xf32>
    %7 = tpu.matmul %5, %6, %cst {dimension_numbers = #tpu.dot_dimension_numbers<[1], [0], [0], [1], [0, 0, 1, 1], [], []>, precision = #tpu.contract_precision<fp32>} : vector<128x96xf32>, vector<96x256xf32>, vector<128x256xf32> -> vector<128x256xf32>
    %cst_3 = arith.constant 1.600000e+01 : f32
    %8 = vector.broadcast %cst_3 : f32 to vector<128x256xf32>
    %9 = arith.mulf %7, %8 : vector<128x256xf32>
    %c0_4 = arith.constant 0 : index
    %c0_5 = arith.constant 0 : index
    %10 = vector.load %arg3[%c0_4, %c0_5] : memref<128x256xf32, #tpu.memory_space<vmem>>, vector<128x256xf32>
    tpu.vector_store %arg3[%c0_4, %c0_5], %9 {strides = array<i32>} : memref<128x256xf32, #tpu.memory_space<vmem>>, vector<128x256xf32>,
    return
  }
  func.func @transform_0(%arg0: i32) -> (i32, i32) {
    %c0_i32 = arith.constant 0 : i32
    %c0_i32_0 = arith.constant 0 : i32
    return %arg0, %c0_i32 : i32, i32
  }
  func.func @transform_1(%arg0: i32) -> (i32, i32) {
    %c0_i32 = arith.constant 0 : i32
    %c0_i32_0 = arith.constant 0 : i32
    %c0_i32_1 = arith.constant 0 : i32
    return %c0_i32, %c0_i32_0 : i32, i32
  }
  func.func @transform_2(%arg0: i32) -> (i32, i32) {
    %c0_i32 = arith.constant 0 : i32
    %c0_i32_0 = arith.constant 0 : i32
    return %arg0, %c0_i32 : i32, i32
  }
}

</mosaic_0001>

<llo_original>
// kernel: tpu_custom_call.1
$region0: #{tpu_custom_call.1}
  #allocation0 [shape = 'u32[]', space=smem, size = 0x4, offset = 0x4, fixed_abs, tag = 'smem constant byte address 0x4 - core index']
  #allocation1 [shape = 'u32[72,128]{1,0:T(1,128)}', space=vmem, size = 0x9000, scoped, tag = 'internal scratch']
  %s0 = inlined_call_operand.vmem [shape: s32[128,1], index: 0, kind: input, shape index: {}]
  %s1 = inlined_call_operand.hbm [shape: f32[96,256], index: 1, kind: input, shape index: {}]
  %s2 = inlined_call_operand.hbm [shape: f32[128,256], index: 2, kind: output, shape index: {}]
  %s3 = sld [smem:[#allocation0]]
  $region22: #{tpu_custom_call.1} parent=0
    _
  %s5 = ssub.s32 1, %s3
  %s6 = scalar_select 0, %s5, %s3
  $region1: #{tpu_custom_call.1} parent=0
    #allocation2 [shape = 'u8[98304]{0}', space=vmem, size = 0x18000, scoped, tag = 'input window, operand 1, single buffered']
    #allocation3 [shape = 's32[1]{0}', space=sflag, size = 0x4, scoped, tag = 'scoped memory for tpu_custom_call.1']
    #allocation4 [shape = 's32[1]{0}', space=sflag, size = 0x4, scoped, tag = 'scoped memory for tpu_custom_call.1']
    #allocation5 [shape = 'u8[131072]{0}', space=vmem, size = 0x20000, scoped, tag = 'output window, operand 0, single buffered']
    %7 = vsyncpa [#allocation3], 0
    %8 = vsyncpa [#allocation4], 0
    // Predicated region
    $region2: #{tpu_custom_call.1} parent=1 // pred_check
      _
    $region3: #{tpu_custom_call.1} parent=1 // pred_check_branch
      %10 = sbr.rel (0) target = $region5
    $region4: #{tpu_custom_call.1} parent=1 // pred_region
      _
    $region5: #{tpu_custom_call.1} parent=1 // pred_fallthru
      _
    // Predicated region
    $region6: #{tpu_custom_call.1} parent=1 // pred_check
      _
    $region7: #{tpu_custom_call.1} parent=1 // pred_check_branch
      %12 = sbr.rel (0) target = $region9
    $region8: #{tpu_custom_call.1} parent=1 // pred_region
      %14 = vsyncadd [#allocation3], 0
      %s15 = sshll.u32 %s1, 4
      %s16 = int_to_ptr.hbm [resolvable:$true] %s15
      %s17 = sshll.u32 [#allocation2], 4
      %s18 = int_to_ptr.vmem [resolvable:$true] %s17
      %23 = dma.hbm_to_vmem [thread:$0]  %s16, 3072, %s18, [#allocation3], 256, 256, 16
    $region9: #{tpu_custom_call.1} parent=1 // pred_fallthru
      _
    // Predicated region
    $region10: #{tpu_custom_call.1} parent=1 // pred_check
      _
    $region11: #{tpu_custom_call.1} parent=1 // pred_check_branch
      %25 = sbr.rel (0) target = $region13
    $region12: #{tpu_custom_call.1} parent=1 // pred_region
      %27 = dma.done [#allocation3], 3072
    $region13: #{tpu_custom_call.1} parent=1 // pred_fallthru
      _
    %v28 = vld [vmem:[%s0] sm:$0xff]
    %v29 = vld [vmem:[%s0 + $0x8] sm:$0xff]
    %v30 = vld [vmem:[%s0 + $0x10] sm:$0xff]
    %v31 = vld [vmem:[%s0 + $0x18] sm:$0xff]
    %v32 = vld [vmem:[%s0 + $0x20] sm:$0xff]
    %v33 = vld [vmem:[%s0 + $0x28] sm:$0xff]
    %v34 = vld [vmem:[%s0 + $0x30] sm:$0xff]
    %v35 = vld [vmem:[%s0 + $0x38] sm:$0xff]
    %v36 = vld [vmem:[%s0 + $0x40] sm:$0xff]
    %v37 = vld [vmem:[%s0 + $0x48] sm:$0xff]
    %v38 = vld [vmem:[%s0 + $0x50] sm:$0xff]
    %v39 = vld [vmem:[%s0 + $0x58] sm:$0xff]
    %v40 = vld [vmem:[%s0 + $0x60] sm:$0xff]
    %v41 = vld [vmem:[%s0 + $0x68] sm:$0xff]
    %v42 = vld [vmem:[%s0 + $0x70] sm:$0xff]
    %v43 = vld [vmem:[%s0 + $0x78] sm:$0xff]
    %v44 = vlaneseq
    %v45 = vand.u32 %v44, 127
    %46 = vset.pattern.permute.xlu0 0
    %47 = vperm.xlu0 %46, %v28
    %v48 = vpop.permute.xlu0 %47
    %49 = vset.pattern.permute.xlu0 0
    %50 = vperm.xlu0 %49, %v29
    %v51 = vpop.permute.xlu0 %50
    %52 = vset.pattern.permute.xlu0 0
    %53 = vperm.xlu0 %52, %v30
    %v54 = vpop.permute.xlu0 %53
    %55 = vset.pattern.permute.xlu0 0
    %56 = vperm.xlu0 %55, %v31
    %v57 = vpop.permute.xlu0 %56
    %58 = vset.pattern.permute.xlu0 0
    %59 = vperm.xlu0 %58, %v32
    %v60 = vpop.permute.xlu0 %59
    %61 = vset.pattern.permute.xlu0 0
    %62 = vperm.xlu0 %61, %v33
    %v63 = vpop.permute.xlu0 %62
    %64 = vset.pattern.permute.xlu0 0
    %65 = vperm.xlu0 %64, %v34
    %v66 = vpop.permute.xlu0 %65
    %67 = vset.pattern.permute.xlu0 0
    %68 = vperm.xlu0 %67, %v35
    %v69 = vpop.permute.xlu0 %68
    %70 = vset.pattern.permute.xlu0 0
    %71 = vperm.xlu0 %70, %v36
    %v72 = vpop.permute.xlu0 %71
    %73 = vset.pattern.permute.xlu0 0
    %74 = vperm.xlu0 %73, %v37
    %v75 = vpop.permute.xlu0 %74
    %76 = vset.pattern.permute.xlu0 0
    %77 = vperm.xlu0 %76, %v38
    %v78 = vpop.permute.xlu0 %77
    %79 = vset.pattern.permute.xlu0 0
    %80 = vperm.xlu0 %79, %v39
    %v81 = vpop.permute.xlu0 %80
    %82 = vset.pattern.permute.xlu0 0
    %83 = vperm.xlu0 %82, %v40
    %v84 = vpop.permute.xlu0 %83
    %85 = vset.pattern.permute.xlu0 0
    %86 = vperm.xlu0 %85, %v41
    %v87 = vpop.permute.xlu0 %86
    %88 = vset.pattern.permute.xlu0 0
    %89 = vperm.xlu0 %88, %v42
    %v90 = vpop.permute.xlu0 %89
    %91 = vset.pattern.permute.xlu0 0
    %92 = vperm.xlu0 %91, %v43
    %v93 = vpop.permute.xlu0 %92
    %vm94 = vcmp.eq.s32.totalorder %v45, %v48
    %vm95 = vcmp.eq.s32.totalorder %v45, %v51
    %vm96 = vcmp.eq.s32.totalorder %v45, %v54
    %vm97 = vcmp.eq.s32.totalorder %v45, %v57
    %vm98 = vcmp.eq.s32.totalorder %v45, %v60
    %vm99 = vcmp.eq.s32.totalorder %v45, %v63
    %vm100 = vcmp.eq.s32.totalorder %v45, %v66
    %vm101 = vcmp.eq.s32.totalorder %v45, %v69
    %vm102 = vcmp.eq.s32.totalorder %v45, %v72
    %vm103 = vcmp.eq.s32.totalorder %v45, %v75
    %vm104 = vcmp.eq.s32.totalorder %v45, %v78
    %vm105 = vcmp.eq.s32.totalorder %v45, %v81
    %vm106 = vcmp.eq.s32.totalorder %v45, %v84
    %vm107 = vcmp.eq.s32.totalorder %v45, %v87
    %vm108 = vcmp.eq.s32.totalorder %v45, %v90
    %vm109 = vcmp.eq.s32.totalorder %v45, %v93
    %v110 = vsel %vm94, 1, 0
    %v111 = vsel %vm95, 1, 0
    %v112 = vsel %vm96, 1, 0
    %v113 = vsel %vm97, 1, 0
    %v114 = vsel %vm98, 1, 0
    %v115 = vsel %vm99, 1, 0
    %v116 = vsel %vm100, 1, 0
    %v117 = vsel %vm101, 1, 0
    %v118 = vsel %vm102, 1, 0
    %v119 = vsel %vm103, 1, 0
    %v120 = vsel %vm104, 1, 0
    %v121 = vsel %vm105, 1, 0
    %v122 = vsel %vm106, 1, 0
    %v123 = vsel %vm107, 1, 0
    %v124 = vsel %vm108, 1, 0
    %v125 = vsel %vm109, 1, 0
    %v126 = vcvt.s32.f32 %v110
    %v127 = vcvt.s32.f32 %v111
    %v128 = vcvt.s32.f32 %v112
    %v129 = vcvt.s32.f32 %v113
    %v130 = vcvt.s32.f32 %v114
    %v131 = vcvt.s32.f32 %v115
    %v132 = vcvt.s32.f32 %v116
    %v133 = vcvt.s32.f32 %v117
    %v134 = vcvt.s32.f32 %v118
    %v135 = vcvt.s32.f32 %v119
    %v136 = vcvt.s32.f32 %v120
    %v137 = vcvt.s32.f32 %v121
    %v138 = vcvt.s32.f32 %v122
    %v139 = vcvt.s32.f32 %v123
    %v140 = vcvt.s32.f32 %v124
    %v141 = vcvt.s32.f32 %v125
    %v142 = vld [vmem:[#allocation2] sm:$0xff]
    %v143 = vld [vmem:[#allocation2 + $0x8] sm:$0xff]
    %v144 = vld [vmem:[#allocation2 + $0x10] sm:$0xff]
    %v145 = vld [vmem:[#allocation2 + $0x18] sm:$0xff]
    %v146 = vld [vmem:[#allocation2 + $0x20] sm:$0xff]
    %v147 = vld [vmem:[#allocation2 + $0x28] sm:$0xff]
    %v148 = vld [vmem:[#allocation2 + $0x30] sm:$0xff]
    %v149 = vld [vmem:[#allocation2 + $0x38] sm:$0xff]
    %v150 = vld [vmem:[#allocation2 + $0x40] sm:$0xff]
    %v151 = vld [vmem:[#allocation2 + $0x48] sm:$0xff]
    %v152 = vld [vmem:[#allocation2 + $0x50] sm:$0xff]
    %v153 = vld [vmem:[#allocation2 + $0x58] sm:$0xff]
    %v154 = vld [vmem:[#allocation2 + $0x60] sm:$0xff]
    %v155 = vld [vmem:[#allocation2 + $0x68] sm:$0xff]
    %v156 = vld [vmem:[#allocation2 + $0x70] sm:$0xff]
    %v157 = vld [vmem:[#allocation2 + $0x78] sm:$0xff]
    %v158 = vld [vmem:[#allocation2 + $0x80] sm:$0xff]
    %v159 = vld [vmem:[#allocation2 + $0x88] sm:$0xff]
    %v160 = vld [vmem:[#allocation2 + $0x90] sm:$0xff]
    %v161 = vld [vmem:[#allocation2 + $0x98] sm:$0xff]
    %v162 = vld [vmem:[#allocation2 + $0xa0] sm:$0xff]
    %v163 = vld [vmem:[#allocation2 + $0xa8] sm:$0xff]
    %v164 = vld [vmem:[#allocation2 + $0xb0] sm:$0xff]
    %v165 = vld [vmem:[#allocation2 + $0xb8] sm:$0xff]
    %vm166 = vcmask 785408
    %v168 = vsel %vm166, %v126, 0
    %v171 = vsel %vm166, %v127, 0
    %v174 = vsel %vm166, %v128, 0
    %v177 = vsel %vm166, %v129, 0
    %v180 = vsel %vm166, %v130, 0
    %v183 = vsel %vm166, %v131, 0
    %v186 = vsel %vm166, %v132, 0
    %v189 = vsel %vm166, %v133, 0
    %v192 = vsel %vm166, %v134, 0
    %v195 = vsel %vm166, %v135, 0
    %v198 = vsel %vm166, %v136, 0
    %v201 = vsel %vm166, %v137, 0
    %v204 = vsel %vm166, %v138, 0
    %v207 = vsel %vm166, %v139, 0
    %v210 = vsel %vm166, %v140, 0
    %v213 = vsel %vm166, %v141, 0
    %215 = vmatpush.msra.mxu0 0.0
    %216 = vmatpush.msra.mxu0 0.0
    %217 = vmatpush.msra.mxu0 0.0
    %218 = vmatpush.msra.mxu0 0.0
    %v219 = vand.u32 %v164, 4294901760
    %220 = vmatpush.msra.mxu0 %v219
    %v221 = vand.u32 %v162, 4294901760
    %222 = vmatpush.msra.mxu0 %v221
    %v223 = vand.u32 %v160, 4294901760
    %224 = vmatpush.msra.mxu0 %v223
    %v225 = vand.u32 %v158, 4294901760
    %226 = vmatpush.msra.mxu0 %v225
    %v227 = vand.u32 %v156, 4294901760
    %228 = vmatpush.msra.mxu0 %v227
    %v229 = vand.u32 %v154, 4294901760
    %230 = vmatpush.msra.mxu0 %v229
    %v231 = vand.u32 %v152, 4294901760
    %232 = vmatpush.msra.mxu0 %v231
    %v233 = vand.u32 %v150, 4294901760
    %234 = vmatpush.msra.mxu0 %v233
    %v235 = vand.u32 %v148, 4294901760
    %236 = vmatpush.msra.mxu0 %v235
    %v237 = vand.u32 %v146, 4294901760
    %238 = vmatpush.msra.mxu0 %v237
    %v239 = vand.u32 %v144, 4294901760
    %240 = vmatpush.msra.mxu0 %v239
    %v241 = vand.u32 %v142, 4294901760
    %242 = vmatpush.msra.mxu0 %v241
    %v243 = vand.u32 %v168, 4294901760
    %v244 = vsub.f32 %v168, %v243
    %v245 = vand.u32 %v244, 4294901760
    %v246 = vsub.f32 %v244, %v245
    %v247 = vand.u32 %v246, 4294901760
    %248 = vmatmul.f32.gmra.mxu0 %v247
    %v249 = vpop.f32.mrf.mxu0
    %v250 = vadd.f32 0.0, %v249
    %v251 = vand.u32 %v171, 4294901760
    %v252 = vsub.f32 %v171, %v251
    %v253 = vand.u32 %v252, 4294901760
    %v254 = vsub.f32 %v252, %v253
    %v255 = vand.u32 %v254, 4294901760
    %256 = vmatmul.f32.gmra.mxu0 %v255
    %v257 = vpop.f32.mrf.mxu0
    %v258 = vadd.f32 0.0, %v257
    %v259 = vand.u32 %v174, 4294901760
    %v260 = vsub.f32 %v174, %v259
    %v261 = vand.u32 %v260, 4294901760
    %v262 = vsub.f32 %v260, %v261
    %v263 = vand.u32 %v262, 4294901760
    %264 = vmatmul.f32.gmra.mxu0 %v263
    %v265 = vpop.f32.mrf.mxu0
    %v266 = vadd.f32 0.0, %v265
    %v267 = vand.u32 %v177, 4294901760
    %v268 = vsub.f32 %v177, %v267
    %v269 = vand.u32 %v268, 4294901760
    %v270 = vsub.f32 %v268, %v269
    %v271 = vand.u32 %v270, 4294901760
    %272 = vmatmul.f32.gmra.mxu0 %v271
    %v273 = vpop.f32.mrf.mxu0
    %v274 = vadd.f32 0.0, %v273
    %v275 = vand.u32 %v180, 4294901760
    %v276 = vsub.f32 %v180, %v275
    %v277 = vand.u32 %v276, 4294901760
    %v278 = vsub.f32 %v276, %v277
    %v279 = vand.u32 %v278, 4294901760
    %280 = vmatmul.f32.gmra.mxu0 %v279
    %v281 = vpop.f32.mrf.mxu0
    %v282 = vadd.f32 0.0, %v281
    %v283 = vand.u32 %v183, 4294901760
    %v284 = vsub.f32 %v183, %v283
    %v285 = vand.u32 %v284, 4294901760
    %v286 = vsub.f32 %v284, %v285
    %v287 = vand.u32 %v286, 4294901760
    %288 = vmatmul.f32.gmra.mxu0 %v287
    %v289 = vpop.f32.mrf.mxu0
    %v290 = vadd.f32 0.0, %v289
    %v291 = vand.u32 %v186, 4294901760
    %v292 = vsub.f32 %v186, %v291
    %v293 = vand.u32 %v292, 4294901760
    %v294 = vsub.f32 %v292, %v293
    %v295 = vand.u32 %v294, 4294901760
    %296 = vmatmul.f32.gmra.mxu0 %v295
    %v297 = vpop.f32.mrf.mxu0
    %v298 = vadd.f32 0.0, %v297
    %v299 = vand.u32 %v189, 4294901760
    %v300 = vsub.f32 %v189, %v299
    %v301 = vand.u32 %v300, 4294901760
    %v302 = vsub.f32 %v300, %v301
    %v303 = vand.u32 %v302, 4294901760
    %304 = vmatmul.f32.gmra.mxu0 %v303
    %v305 = vpop.f32.mrf.mxu0
    %v306 = vadd.f32 0.0, %v305
    %v307 = vand.u32 %v192, 4294901760
    %v308 = vsub.f32 %v192, %v307
    %v309 = vand.u32 %v308, 4294901760
    %v310 = vsub.f32 %v308, %v309
    %v311 = vand.u32 %v310, 4294901760
    %312 = vmatmul.f32.gmra.mxu0 %v311
    %v313 = vpop.f32.mrf.mxu0
    %v314 = vadd.f32 0.0, %v313
    %v315 = vand.u32 %v195, 4294901760
    %v316 = vsub.f32 %v195, %v315
    %v317 = vand.u32 %v316, 4294901760
    %v318 = vsub.f32 %v316, %v317
    %v319 = vand.u32 %v318, 4294901760
    %320 = vmatmul.f32.gmra.mxu0 %v319
    %v321 = vpop.f32.mrf.mxu0
    %v322 = vadd.f32 0.0, %v321
    %v323 = vand.u32 %v198, 4294901760
    %v324 = vsub.f32 %v198, %v323
    %v325 = vand.u32 %v324, 4294901760
    %v326 = vsub.f32 %v324, %v325
    %v327 = vand.u32 %v326, 4294901760
    %328 = vmatmul.f32.gmra.mxu0 %v327
    %v329 = vpop.f32.mrf.mxu0
    %v330 = vadd.f32 0.0, %v329
    %v331 = vand.u32 %v201, 4294901760
    %v332 = vsub.f32 %v201, %v331
    %v333 = vand.u32 %v332, 4294901760
    %v334 = vsub.f32 %v332, %v333
    %v335 = vand.u32 %v334, 4294901760
    %336 = vmatmul.f32.gmra.mxu0 %v335
    %v337 = vpop.f32.mrf.mxu0
    %v338 = vadd.f32 0.0, %v337
    %v339 = vand.u32 %v204, 4294901760
    %v340 = vsub.f32 %v204, %v339
    %v341 = vand.u32 %v340, 4294901760
    %v342 = vsub.f32 %v340, %v341
    %v343 = vand.u32 %v342, 4294901760
    %344 = vmatmul.f32.gmra.mxu0 %v343
    %v345 = vpop.f32.mrf.mxu0
    %v346 = vadd.f32 0.0, %v345
    %v347 = vand.u32 %v207, 4294901760
    %v348 = vsub.f32 %v207, %v347
    %v349 = vand.u32 %v348, 4294901760
    %v350 = vsub.f32 %v348, %v349
    %v351 = vand.u32 %v350, 4294901760
    %352 = vmatmul.f32.gmra.mxu0 %v351
    %v353 = vpop.f32.mrf.mxu0
    %v354 = vadd.f32 0.0, %v353
    %v355 = vand.u32 %v210, 4294901760
    %v356 = vsub.f32 %v210, %v355
    %v357 = vand.u32 %v356, 4294901760
    %v358 = vsub.f32 %v356, %v357
    %v359 = vand.u32 %v358, 4294901760
    %360 = vmatmul.f32.gmra.mxu0 %v359
    %v361 = vpop.f32.mrf.mxu0
    %v362 = vadd.f32 0.0, %v361
    %v363 = vand.u32 %v213, 4294901760
    %v364 = vsub.f32 %v213, %v363
    %v365 = vand.u32 %v364, 4294901760
    %v366 = vsub.f32 %v364, %v365
    %v367 = vand.u32 %v366, 4294901760
    %368 = vmatmul.f32.gmra.mxu0 %v367
    %v369 = vpop.f32.mrf.mxu0
    %v370 = vadd.f32 0.0, %v369
    %371 = vdwg.mxu0
    %372 = vmatpush.msra.mxu0 0.0
    %373 = vmatpush.msra.mxu0 0.0
    %374 = vmatpush.msra.mxu0 0.0
    %375 = vmatpush.msra.mxu0 0.0
    %v376 = vand.u32 %v164, 4294901760
    %v377 = vsub.f32 %v164, %v376
    %v378 = vand.u32 %v377, 4294901760
    %v379 = vsub.f32 %v377, %v378
    %v380 = vand.u32 %v379, 4294901760
    %381 = vmatpush.msra.mxu0 %v380
    %v382 = vand.u32 %v162, 4294901760
    %v383 = vsub.f32 %v162, %v382
    %v384 = vand.u32 %v383, 4294901760
    %v385 = vsub.f32 %v383, %v384
    %v386 = vand.u32 %v385, 4294901760
    %387 = vmatpush.msra.mxu0 %v386
    %v388 = vand.u32 %v160, 4294901760
    %v389 = vsub.f32 %v160, %v388
    %v390 = vand.u32 %v389, 4294901760
    %v391 = vsub.f32 %v389, %v390
    %v392 = vand.u32 %v391, 4294901760
    %393 = vmatpush.msra.mxu0 %v392
    %v394 = vand.u32 %v158, 4294901760
    %v395 = vsub.f32 %v158, %v394
    %v396 = vand.u32 %v395, 4294901760
    %v397 = vsub.f32 %v395, %v396
    %v398 = vand.u32 %v397, 4294901760
    %399 = vmatpush.msra.mxu0 %v398
    %v400 = vand.u32 %v156, 4294901760
    %v401 = vsub.f32 %v156, %v400
    %v402 = vand.u32 %v401, 4294901760
    %v403 = vsub.f32 %v401, %v402
    %v404 = vand.u32 %v403, 4294901760
    %405 = vmatpush.msra.mxu0 %v404
    %v406 = vand.u32 %v154, 4294901760
    %v407 = vsub.f32 %v154, %v406
    %v408 = vand.u32 %v407, 4294901760
    %v409 = vsub.f32 %v407, %v408
    %v410 = vand.u32 %v409, 4294901760
    %411 = vmatpush.msra.mxu0 %v410
    %v412 = vand.u32 %v152, 4294901760
    %v413 = vsub.f32 %v152, %v412
    %v414 = vand.u32 %v413, 4294901760
    %v415 = vsub.f32 %v413, %v414
    %v416 = vand.u32 %v415, 4294901760
    %417 = vmatpush.msra.mxu0 %v416
    %v418 = vand.u32 %v150, 4294901760
    %v419 = vsub.f32 %v150, %v418
    %v420 = vand.u32 %v419, 4294901760
    %v421 = vsub.f32 %v419, %v420
    %v422 = vand.u32 %v421, 4294901760
    %423 = vmatpush.msra.mxu0 %v422
    %v424 = vand.u32 %v148, 4294901760
    %v425 = vsub.f32 %v148, %v424
    %v426 = vand.u32 %v425, 4294901760
    %v427 = vsub.f32 %v425, %v426
    %v428 = vand.u32 %v427, 4294901760
    %429 = vmatpush.msra.mxu0 %v428
    %v430 = vand.u32 %v146, 4294901760
    %v431 = vsub.f32 %v146, %v430
    %v432 = vand.u32 %v431, 4294901760
    %v433 = vsub.f32 %v431, %v432
    %v434 = vand.u32 %v433, 4294901760
    %435 = vmatpush.msra.mxu0 %v434
    %v436 = vand.u32 %v144, 4294901760
    %v437 = vsub.f32 %v144, %v436
    %v438 = vand.u32 %v437, 4294901760
    %v439 = vsub.f32 %v437, %v438
    %v440 = vand.u32 %v439, 4294901760
    %441 = vmatpush.msra.mxu0 %v440
    %v442 = vand.u32 %v142, 4294901760
    %v443 = vsub.f32 %v142, %v442
    %v444 = vand.u32 %v443, 4294901760
    %v445 = vsub.f32 %v443, %v444
    %v446 = vand.u32 %v445, 4294901760
    %447 = vmatpush.msra.mxu0 %v446
    %v448 = vand.u32 %v168, 4294901760
    %449 = vmatmul.f32.gmra.mxu0 %v448
    %v450 = vpop.f32.mrf.mxu0
    %v451 = vadd.f32 %v250, %v450
    %v452 = vand.u32 %v171, 4294901760
    %453 = vmatmul.f32.gmra.mxu0 %v452
    %v454 = vpop.f32.mrf.mxu0
    %v455 = vadd.f32 %v258, %v454
    %v456 = vand.u32 %v174, 4294901760
    %457 = vmatmul.f32.gmra.mxu0 %v456
    %v458 = vpop.f32.mrf.mxu0
    %v459 = vadd.f32 %v266, %v458
    %v460 = vand.u32 %v177, 4294901760
    %461 = vmatmul.f32.gmra.mxu0 %v460
    %v462 = vpop.f32.mrf.mxu0
    %v463 = vadd.f32 %v274, %v462
    %v464 = vand.u32 %v180, 4294901760
    %465 = vmatmul.f32.gmra.mxu0 %v464
    %v466 = vpop.f32.mrf.mxu0
    %v467 = vadd.f32 %v282, %v466
    %v468 = vand.u32 %v183, 4294901760
    %469 = vmatmul.f32.gmra.mxu0 %v468
    %v470 = vpop.f32.mrf.mxu0
    %v471 = vadd.f32 %v290, %v470
    %v472 = vand.u32 %v186, 4294901760
    %473 = vmatmul.f32.gmra.mxu0 %v472
    %v474 = vpop.f32.mrf.mxu0
    %v475 = vadd.f32 %v298, %v474
    %v476 = vand.u32 %v189, 4294901760
    %477 = vmatmul.f32.gmra.mxu0 %v476
    %v478 = vpop.f32.mrf.mxu0
    %v479 = vadd.f32 %v306, %v478
    %v480 = vand.u32 %v192, 4294901760
    %481 = vmatmul.f32.gmra.mxu0 %v480
    %v482 = vpop.f32.mrf.mxu0
    %v483 = vadd.f32 %v314, %v482
    %v484 = vand.u32 %v195, 4294901760
    %485 = vmatmul.f32.gmra.mxu0 %v484
    %v486 = vpop.f32.mrf.mxu0
    %v487 = vadd.f32 %v322, %v486
    %v488 = vand.u32 %v198, 4294901760
    %489 = vmatmul.f32.gmra.mxu0 %v488
    %v490 = vpop.f32.mrf.mxu0
    %v491 = vadd.f32 %v330, %v490
    %v492 = vand.u32 %v201, 4294901760
    %493 = vmatmul.f32.gmra.mxu0 %v492
    %v494 = vpop.f32.mrf.mxu0
    %v495 = vadd.f32 %v338, %v494
    %v496 = vand.u32 %v204, 4294901760
    %497 = vmatmul.f32.gmra.mxu0 %v496
    %v498 = vpop.f32.mrf.mxu0
    %v499 = vadd.f32 %v346, %v498
    %v500 = vand.u32 %v207, 4294901760
    %501 = vmatmul.f32.gmra.mxu0 %v500
    %v502 = vpop.f32.mrf.mxu0
    %v503 = vadd.f32 %v354, %v502
    %v504 = vand.u32 %v210, 4294901760
    %505 = vmatmul.f32.gmra.mxu0 %v504
    %v506 = vpop.f32.mrf.mxu0
    %v507 = vadd.f32 %v362, %v506
    %v508 = vand.u32 %v213, 4294901760
    %509 = vmatmul.f32.gmra.mxu0 %v508
    %v510 = vpop.f32.mrf.mxu0
    %v511 = vadd.f32 %v370, %v510
    %512 = vdwg.mxu0
    %513 = vmatpush.msra.mxu0 0.0
    %514 = vmatpush.msra.mxu0 0.0
    %515 = vmatpush.msra.mxu0 0.0
    %516 = vmatpush.msra.mxu0 0.0
    %v517 = vand.u32 %v164, 4294901760
    %v518 = vsub.f32 %v164, %v517
    %519 = vmatpush.msra.mxu0 %v518
    %v520 = vand.u32 %v162, 4294901760
    %v521 = vsub.f32 %v162, %v520
    %522 = vmatpush.msra.mxu0 %v521
    %v523 = vand.u32 %v160, 4294901760
    %v524 = vsub.f32 %v160, %v523
    %525 = vmatpush.msra.mxu0 %v524
    %v526 = vand.u32 %v158, 4294901760
    %v527 = vsub.f32 %v158, %v526
    %528 = vmatpush.msra.mxu0 %v527
    %v529 = vand.u32 %v156, 4294901760
    %v530 = vsub.f32 %v156, %v529
    %531 = vmatpush.msra.mxu0 %v530
    %v532 = vand.u32 %v154, 4294901760
    %v533 = vsub.f32 %v154, %v532
    %534 = vmatpush.msra.mxu0 %v533
    %v535 = vand.u32 %v152, 4294901760
    %v536 = vsub.f32 %v152, %v535
    %537 = vmatpush.msra.mxu0 %v536
    %v538 = vand.u32 %v150, 4294901760
    %v539 = vsub.f32 %v150, %v538
    %540 = vmatpush.msra.mxu0 %v539
    %v541 = vand.u32 %v148, 4294901760
    %v542 = vsub.f32 %v148, %v541
    %543 = vmatpush.msra.mxu0 %v542
    %v544 = vand.u32 %v146, 4294901760
    %v545 = vsub.f32 %v146, %v544
    %546 = vmatpush.msra.mxu0 %v545
    %v547 = vand.u32 %v144, 4294901760
    %v548 = vsub.f32 %v144, %v547
    %549 = vmatpush.msra.mxu0 %v548
    %v550 = vand.u32 %v142, 4294901760
    %v551 = vsub.f32 %v142, %v550
    %552 = vmatpush.msra.mxu0 %v551
    %v553 = vand.u32 %v168, 4294901760
    %v554 = vsub.f32 %v168, %v553
    %555 = vmatmul.f32.gmra.mxu0 %v554
    %v556 = vpop.f32.mrf.mxu0
    %v557 = vadd.f32 %v451, %v556
    %v558 = vand.u32 %v171, 4294901760
    %v559 = vsub.f32 %v171, %v558
    %560 = vmatmul.f32.gmra.mxu0 %v559
    %v561 = vpop.f32.mrf.mxu0
    %v562 = vadd.f32 %v455, %v561
    %v563 = vand.u32 %v174, 4294901760
    %v564 = vsub.f32 %v174, %v563
    %565 = vmatmul.f32.gmra.mxu0 %v564
    %v566 = vpop.f32.mrf.mxu0
    %v567 = vadd.f32 %v459, %v566
    %v568 = vand.u32 %v177, 4294901760
    %v569 = vsub.f32 %v177, %v568
    %570 = vmatmul.f32.gmra.mxu0 %v569
    %v571 = vpop.f32.mrf.mxu0
    %v572 = vadd.f32 %v463, %v571
    %v573 = vand.u32 %v180, 4294901760
    %v574 = vsub.f32 %v180, %v573
    %575 = vmatmul.f32.gmra.mxu0 %v574
    %v576 = vpop.f32.mrf.mxu0
    %v577 = vadd.f32 %v467, %v576
    %v578 = vand.u32 %v183, 4294901760
    %v579 = vsub.f32 %v183, %v578
    %580 = vmatmul.f32.gmra.mxu0 %v579
    %v581 = vpop.f32.mrf.mxu0
    %v582 = vadd.f32 %v471, %v581
    %v583 = vand.u32 %v186, 4294901760
    %v584 = vsub.f32 %v186, %v583
    %585 = vmatmul.f32.gmra.mxu0 %v584
    %v586 = vpop.f32.mrf.mxu0
    %v587 = vadd.f32 %v475, %v586
    %v588 = vand.u32 %v189, 4294901760
    %v589 = vsub.f32 %v189, %v588
    %590 = vmatmul.f32.gmra.mxu0 %v589
    %v591 = vpop.f32.mrf.mxu0
    %v592 = vadd.f32 %v479, %v591
    %v593 = vand.u32 %v192, 4294901760
    %v594 = vsub.f32 %v192, %v593
    %595 = vmatmul.f32.gmra.mxu0 %v594
    %v596 = vpop.f32.mrf.mxu0
    %v597 = vadd.f32 %v483, %v596
    %v598 = vand.u32 %v195, 4294901760
    %v599 = vsub.f32 %v195, %v598
    %600 = vmatmul.f32.gmra.mxu0 %v599
    %v601 = vpop.f32.mrf.mxu0
    %v602 = vadd.f32 %v487, %v601
    %v603 = vand.u32 %v198, 4294901760
    %v604 = vsub.f32 %v198, %v603
    %605 = vmatmul.f32.gmra.mxu0 %v604
    %v606 = vpop.f32.mrf.mxu0
    %v607 = vadd.f32 %v491, %v606
    %v608 = vand.u32 %v201, 4294901760
    %v609 = vsub.f32 %v201, %v608
    %610 = vmatmul.f32.gmra.mxu0 %v609
    %v611 = vpop.f32.mrf.mxu0
    %v612 = vadd.f32 %v495, %v611
    %v613 = vand.u32 %v204, 4294901760
    %v614 = vsub.f32 %v204, %v613
    %615 = vmatmul.f32.gmra.mxu0 %v614
    %v616 = vpop.f32.mrf.mxu0
    %v617 = vadd.f32 %v499, %v616
    %v618 = vand.u32 %v207, 4294901760
    %v619 = vsub.f32 %v207, %v618
    %620 = vmatmul.f32.gmra.mxu0 %v619
    %v621 = vpop.f32.mrf.mxu0
    %v622 = vadd.f32 %v503, %v621
    %v623 = vand.u32 %v210, 4294901760
    %v624 = vsub.f32 %v210, %v623
    %625 = vmatmul.f32.gmra.mxu0 %v624
    %v626 = vpop.f32.mrf.mxu0
    %v627 = vadd.f32 %v507, %v626
    %v628 = vand.u32 %v213, 4294901760
    %v629 = vsub.f32 %v213, %v628
    %630 = vmatmul.f32.gmra.mxu0 %v629
    %v631 = vpop.f32.mrf.mxu0
    %v632 = vadd.f32 %v511, %v631
    %633 = vdwg.mxu0
    %634 = vmatpush.msra.mxu0 0.0
    %635 = vmatpush.msra.mxu0 0.0
    %636 = vmatpush.msra.mxu0 0.0
    %637 = vmatpush.msra.mxu0 0.0
    %v638 = vand.u32 %v164, 4294901760
    %639 = vmatpush.msra.mxu0 %v638
    %v640 = vand.u32 %v162, 4294901760
    %641 = vmatpush.msra.mxu0 %v640
    %v642 = vand.u32 %v160, 4294901760
    %643 = vmatpush.msra.mxu0 %v642
    %v644 = vand.u32 %v158, 4294901760
    %645 = vmatpush.msra.mxu0 %v644
    %v646 = vand.u32 %v156, 4294901760
    %647 = vmatpush.msra.mxu0 %v646
    %v648 = vand.u32 %v154, 4294901760
    %649 = vmatpush.msra.mxu0 %v648
    %v650 = vand.u32 %v152, 4294901760
    %651 = vmatpush.msra.mxu0 %v650
    %v652 = vand.u32 %v150, 4294901760
    %653 = vmatpush.msra.mxu0 %v652
    %v654 = vand.u32 %v148, 4294901760
    %655 = vmatpush.msra.mxu0 %v654
    %v656 = vand.u32 %v146, 4294901760
    %657 = vmatpush.msra.mxu0 %v656
    %v658 = vand.u32 %v144, 4294901760
    %659 = vmatpush.msra.mxu0 %v658
    %v660 = vand.u32 %v142, 4294901760
    %661 = vmatpush.msra.mxu0 %v660
    %v662 = vand.u32 %v168, 4294901760
    %v663 = vsub.f32 %v168, %v662
    %v664 = vand.u32 %v663, 4294901760
    %665 = vmatmul.f32.gmra.mxu0 %v664
    %v666 = vpop.f32.mrf.mxu0
    %v667 = vadd.f32 %v557, %v666
    %v668 = vand.u32 %v171, 4294901760
    %v669 = vsub.f32 %v171, %v668
    %v670 = vand.u32 %v669, 4294901760
    %671 = vmatmul.f32.gmra.mxu0 %v670
    %v672 = vpop.f32.mrf.mxu0
    %v673 = vadd.f32 %v562, %v672
    %v674 = vand.u32 %v174, 4294901760
    %v675 = vsub.f32 %v174, %v674
    %v676 = vand.u32 %v675, 4294901760
    %677 = vmatmul.f32.gmra.mxu0 %v676
    %v678 = vpop.f32.mrf.mxu0
    %v679 = vadd.f32 %v567, %v678
    %v680 = vand.u32 %v177, 4294901760
    %v681 = vsub.f32 %v177, %v680
    %v682 = vand.u32 %v681, 4294901760
    %683 = vmatmul.f32.gmra.mxu0 %v682
    %v684 = vpop.f32.mrf.mxu0
    %v685 = vadd.f32 %v572, %v684
    %v686 = vand.u32 %v180, 4294901760
    %v687 = vsub.f32 %v180, %v686
    %v688 = vand.u32 %v687, 4294901760
    %689 = vmatmul.f32.gmra.mxu0 %v688
    %v690 = vpop.f32.mrf.mxu0
    %v691 = vadd.f32 %v577, %v690
    %v692 = vand.u32 %v183, 4294901760
    %v693 = vsub.f32 %v183, %v692
    %v694 = vand.u32 %v693, 4294901760
    %695 = vmatmul.f32.gmra.mxu0 %v694
    %v696 = vpop.f32.mrf.mxu0
    %v697 = vadd.f32 %v582, %v696
    %v698 = vand.u32 %v186, 4294901760
    %v699 = vsub.f32 %v186, %v698
    %v700 = vand.u32 %v699, 4294901760
    %701 = vmatmul.f32.gmra.mxu0 %v700
    %v702 = vpop.f32.mrf.mxu0
    %v703 = vadd.f32 %v587, %v702
    %v704 = vand.u32 %v189, 4294901760
    %v705 = vsub.f32 %v189, %v704
    %v706 = vand.u32 %v705, 4294901760
    %707 = vmatmul.f32.gmra.mxu0 %v706
    %v708 = vpop.f32.mrf.mxu0
    %v709 = vadd.f32 %v592, %v708
    %v710 = vand.u32 %v192, 4294901760
    %v711 = vsub.f32 %v192, %v710
    %v712 = vand.u32 %v711, 4294901760
    %713 = vmatmul.f32.gmra.mxu0 %v712
    %v714 = vpop.f32.mrf.mxu0
    %v715 = vadd.f32 %v597, %v714
    %v716 = vand.u32 %v195, 4294901760
    %v717 = vsub.f32 %v195, %v716
    %v718 = vand.u32 %v717, 4294901760
    %719 = vmatmul.f32.gmra.mxu0 %v718
    %v720 = vpop.f32.mrf.mxu0
    %v721 = vadd.f32 %v602, %v720
    %v722 = vand.u32 %v198, 4294901760
    %v723 = vsub.f32 %v198, %v722
    %v724 = vand.u32 %v723, 4294901760
    %725 = vmatmul.f32.gmra.mxu0 %v724
    %v726 = vpop.f32.mrf.mxu0
    %v727 = vadd.f32 %v607, %v726
    %v728 = vand.u32 %v201, 4294901760
    %v729 = vsub.f32 %v201, %v728
    %v730 = vand.u32 %v729, 4294901760
    %731 = vmatmul.f32.gmra.mxu0 %v730
    %v732 = vpop.f32.mrf.mxu0
    %v733 = vadd.f32 %v612, %v732
    %v734 = vand.u32 %v204, 4294901760
    %v735 = vsub.f32 %v204, %v734
    %v736 = vand.u32 %v735, 4294901760
    %737 = vmatmul.f32.gmra.mxu0 %v736
    %v738 = vpop.f32.mrf.mxu0
    %v739 = vadd.f32 %v617, %v738
    %v740 = vand.u32 %v207, 4294901760
    %v741 = vsub.f32 %v207, %v740
    %v742 = vand.u32 %v741, 4294901760
    %743 = vmatmul.f32.gmra.mxu0 %v742
    %v744 = vpop.f32.mrf.mxu0
    %v745 = vadd.f32 %v622, %v744
    %v746 = vand.u32 %v210, 4294901760
    %v747 = vsub.f32 %v210, %v746
    %v748 = vand.u32 %v747, 4294901760
    %749 = vmatmul.f32.gmra.mxu0 %v748
    %v750 = vpop.f32.mrf.mxu0
    %v751 = vadd.f32 %v627, %v750
    %v752 = vand.u32 %v213, 4294901760
    %v753 = vsub.f32 %v213, %v752
    %v754 = vand.u32 %v753, 4294901760
    %755 = vmatmul.f32.gmra.mxu0 %v754
    %v756 = vpop.f32.mrf.mxu0
    %v757 = vadd.f32 %v632, %v756
    %758 = vdwg.mxu0
    %759 = vmatpush.msra.mxu0 0.0
    %760 = vmatpush.msra.mxu0 0.0
    %761 = vmatpush.msra.mxu0 0.0
    %762 = vmatpush.msra.mxu0 0.0
    %v763 = vand.u32 %v164, 4294901760
    %v764 = vsub.f32 %v164, %v763
    %v765 = vand.u32 %v764, 4294901760
    %766 = vmatpush.msra.mxu0 %v765
    %v767 = vand.u32 %v162, 4294901760
    %v768 = vsub.f32 %v162, %v767
    %v769 = vand.u32 %v768, 4294901760
    %770 = vmatpush.msra.mxu0 %v769
    %v771 = vand.u32 %v160, 4294901760
    %v772 = vsub.f32 %v160, %v771
    %v773 = vand.u32 %v772, 4294901760
    %774 = vmatpush.msra.mxu0 %v773
    %v775 = vand.u32 %v158, 4294901760
    %v776 = vsub.f32 %v158, %v775
    %v777 = vand.u32 %v776, 4294901760
    %778 = vmatpush.msra.mxu0 %v777
    %v779 = vand.u32 %v156, 4294901760
    %v780 = vsub.f32 %v156, %v779
    %v781 = vand.u32 %v780, 4294901760
    %782 = vmatpush.msra.mxu0 %v781
    %v783 = vand.u32 %v154, 4294901760
    %v784 = vsub.f32 %v154, %v783
    %v785 = vand.u32 %v784, 4294901760
    %786 = vmatpush.msra.mxu0 %v785
    %v787 = vand.u32 %v152, 4294901760
    %v788 = vsub.f32 %v152, %v787
    %v789 = vand.u32 %v788, 4294901760
    %790 = vmatpush.msra.mxu0 %v789
    %v791 = vand.u32 %v150, 4294901760
    %v792 = vsub.f32 %v150, %v791
    %v793 = vand.u32 %v792, 4294901760
    %794 = vmatpush.msra.mxu0 %v793
    %v795 = vand.u32 %v148, 4294901760
    %v796 = vsub.f32 %v148, %v795
    %v797 = vand.u32 %v796, 4294901760
    %798 = vmatpush.msra.mxu0 %v797
    %v799 = vand.u32 %v146, 4294901760
    %v800 = vsub.f32 %v146, %v799
    %v801 = vand.u32 %v800, 4294901760
    %802 = vmatpush.msra.mxu0 %v801
    %v803 = vand.u32 %v144, 4294901760
    %v804 = vsub.f32 %v144, %v803
    %v805 = vand.u32 %v804, 4294901760
    %806 = vmatpush.msra.mxu0 %v805
    %v807 = vand.u32 %v142, 4294901760
    %v808 = vsub.f32 %v142, %v807
    %v809 = vand.u32 %v808, 4294901760
    %810 = vmatpush.msra.mxu0 %v809
    %v811 = vand.u32 %v168, 4294901760
    %812 = vmatmul.f32.gmra.mxu0 %v811
    %v813 = vpop.f32.mrf.mxu0
    %v814 = vadd.f32 %v667, %v813
    %v815 = vand.u32 %v171, 4294901760
    %816 = vmatmul.f32.gmra.mxu0 %v815
    %v817 = vpop.f32.mrf.mxu0
    %v818 = vadd.f32 %v673, %v817
    %v819 = vand.u32 %v174, 4294901760
    %820 = vmatmul.f32.gmra.mxu0 %v819
    %v821 = vpop.f32.mrf.mxu0
    %v822 = vadd.f32 %v679, %v821
    %v823 = vand.u32 %v177, 4294901760
    %824 = vmatmul.f32.gmra.mxu0 %v823
    %v825 = vpop.f32.mrf.mxu0
    %v826 = vadd.f32 %v685, %v825
    %v827 = vand.u32 %v180, 4294901760
    %828 = vmatmul.f32.gmra.mxu0 %v827
    %v829 = vpop.f32.mrf.mxu0
    %v830 = vadd.f32 %v691, %v829
    %v831 = vand.u32 %v183, 4294901760
    %832 = vmatmul.f32.gmra.mxu0 %v831
    %v833 = vpop.f32.mrf.mxu0
    %v834 = vadd.f32 %v697, %v833
    %v835 = vand.u32 %v186, 4294901760
    %836 = vmatmul.f32.gmra.mxu0 %v835
    %v837 = vpop.f32.mrf.mxu0
    %v838 = vadd.f32 %v703, %v837
    %v839 = vand.u32 %v189, 4294901760
    %840 = vmatmul.f32.gmra.mxu0 %v839
    %v841 = vpop.f32.mrf.mxu0
    %v842 = vadd.f32 %v709, %v841
    %v843 = vand.u32 %v192, 4294901760
    %844 = vmatmul.f32.gmra.mxu0 %v843
    %v845 = vpop.f32.mrf.mxu0
    %v846 = vadd.f32 %v715, %v845
    %v847 = vand.u32 %v195, 4294901760
    %848 = vmatmul.f32.gmra.mxu0 %v847
    %v849 = vpop.f32.mrf.mxu0
    %v850 = vadd.f32 %v721, %v849
    %v851 = vand.u32 %v198, 4294901760
    %852 = vmatmul.f32.gmra.mxu0 %v851
    %v853 = vpop.f32.mrf.mxu0
    %v854 = vadd.f32 %v727, %v853
    %v855 = vand.u32 %v201, 4294901760
    %856 = vmatmul.f32.gmra.mxu0 %v855
    %v857 = vpop.f32.mrf.mxu0
    %v858 = vadd.f32 %v733, %v857
    %v859 = vand.u32 %v204, 4294901760
    %860 = vmatmul.f32.gmra.mxu0 %v859
    %v861 = vpop.f32.mrf.mxu0
    %v862 = vadd.f32 %v739, %v861
    %v863 = vand.u32 %v207, 4294901760
    %864 = vmatmul.f32.gmra.mxu0 %v863
    %v865 = vpop.f32.mrf.mxu0
    %v866 = vadd.f32 %v745, %v865
    %v867 = vand.u32 %v210, 4294901760
    %868 = vmatmul.f32.gmra.mxu0 %v867
    %v869 = vpop.f32.mrf.mxu0
    %v870 = vadd.f32 %v751, %v869
    %v871 = vand.u32 %v213, 4294901760
    %872 = vmatmul.f32.gmra.mxu0 %v871
    %v873 = vpop.f32.mrf.mxu0
    %v874 = vadd.f32 %v757, %v873
    %875 = vdwg.mxu0
    %876 = vmatpush.msra.mxu0 0.0
    %877 = vmatpush.msra.mxu0 0.0
    %878 = vmatpush.msra.mxu0 0.0
    %879 = vmatpush.msra.mxu0 0.0
    %v880 = vand.u32 %v164, 4294901760
    %881 = vmatpush.msra.mxu0 %v880
    %v882 = vand.u32 %v162, 4294901760
    %883 = vmatpush.msra.mxu0 %v882
    %v884 = vand.u32 %v160, 4294901760
    %885 = vmatpush.msra.mxu0 %v884
    %v886 = vand.u32 %v158, 4294901760
    %887 = vmatpush.msra.mxu0 %v886
    %v888 = vand.u32 %v156, 4294901760
    %889 = vmatpush.msra.mxu0 %v888
    %v890 = vand.u32 %v154, 4294901760
    %891 = vmatpush.msra.mxu0 %v890
    %v892 = vand.u32 %v152, 4294901760
    %893 = vmatpush.msra.mxu0 %v892
    %v894 = vand.u32 %v150, 4294901760
    %895 = vmatpush.msra.mxu0 %v894
    %v896 = vand.u32 %v148, 4294901760
    %897 = vmatpush.msra.mxu0 %v896
    %v898 = vand.u32 %v146, 4294901760
    %899 = vmatpush.msra.mxu0 %v898
    %v900 = vand.u32 %v144, 4294901760
    %901 = vmatpush.msra.mxu0 %v900
    %v902 = vand.u32 %v142, 4294901760
    %903 = vmatpush.msra.mxu0 %v902
    %v904 = vand.u32 %v168, 4294901760
    %905 = vmatmul.f32.gmra.mxu0 %v904
    %v906 = vpop.f32.mrf.mxu0
    %v907 = vadd.f32 %v814, %v906
    %v908 = vand.u32 %v171, 4294901760
    %909 = vmatmul.f32.gmra.mxu0 %v908
    %v910 = vpop.f32.mrf.mxu0
    %v911 = vadd.f32 %v818, %v910
    %v912 = vand.u32 %v174, 4294901760
    %913 = vmatmul.f32.gmra.mxu0 %v912
    %v914 = vpop.f32.mrf.mxu0
    %v915 = vadd.f32 %v822, %v914
    %v916 = vand.u32 %v177, 4294901760
    %917 = vmatmul.f32.gmra.mxu0 %v916
    %v918 = vpop.f32.mrf.mxu0
    %v919 = vadd.f32 %v826, %v918
    %v920 = vand.u32 %v180, 4294901760
    %921 = vmatmul.f32.gmra.mxu0 %v920
    %v922 = vpop.f32.mrf.mxu0
    %v923 = vadd.f32 %v830, %v922
    %v924 = vand.u32 %v183, 4294901760
    %925 = vmatmul.f32.gmra.mxu0 %v924
    %v926 = vpop.f32.mrf.mxu0
    %v927 = vadd.f32 %v834, %v926
    %v928 = vand.u32 %v186, 4294901760
    %929 = vmatmul.f32.gmra.mxu0 %v928
    %v930 = vpop.f32.mrf.mxu0
    %v931 = vadd.f32 %v838, %v930
    %v932 = vand.u32 %v189, 4294901760
    %933 = vmatmul.f32.gmra.mxu0 %v932
    %v934 = vpop.f32.mrf.mxu0
    %v935 = vadd.f32 %v842, %v934
    %v936 = vand.u32 %v192, 4294901760
    %937 = vmatmul.f32.gmra.mxu0 %v936
    %v938 = vpop.f32.mrf.mxu0
    %v939 = vadd.f32 %v846, %v938
    %v940 = vand.u32 %v195, 4294901760
    %941 = vmatmul.f32.gmra.mxu0 %v940
    %v942 = vpop.f32.mrf.mxu0
    %v943 = vadd.f32 %v850, %v942
    %v944 = vand.u32 %v198, 4294901760
    %945 = vmatmul.f32.gmra.mxu0 %v944
    %v946 = vpop.f32.mrf.mxu0
    %v947 = vadd.f32 %v854, %v946
    %v948 = vand.u32 %v201, 4294901760
    %949 = vmatmul.f32.gmra.mxu0 %v948
    %v950 = vpop.f32.mrf.mxu0
    %v951 = vadd.f32 %v858, %v950
    %v952 = vand.u32 %v204, 4294901760
    %953 = vmatmul.f32.gmra.mxu0 %v952
    %v954 = vpop.f32.mrf.mxu0
    %v955 = vadd.f32 %v862, %v954
    %v956 = vand.u32 %v207, 4294901760
    %957 = vmatmul.f32.gmra.mxu0 %v956
    %v958 = vpop.f32.mrf.mxu0
    %v959 = vadd.f32 %v866, %v958
    %v960 = vand.u32 %v210, 4294901760
    %961 = vmatmul.f32.gmra.mxu0 %v960
    %v962 = vpop.f32.mrf.mxu0
    %v963 = vadd.f32 %v870, %v962
    %v964 = vand.u32 %v213, 4294901760
    %965 = vmatmul.f32.gmra.mxu0 %v964
    %v966 = vpop.f32.mrf.mxu0
    %v967 = vadd.f32 %v874, %v966
    %968 = vdwg.mxu0
    %969 = vmatpush.msra.mxu0 0.0
    %970 = vmatpush.msra.mxu0 0.0
    %971 = vmatpush.msra.mxu0 0.0
    %972 = vmatpush.msra.mxu0 0.0
    %v973 = vand.u32 %v165, 4294901760
    %974 = vmatpush.msra.mxu0 %v973
    %v975 = vand.u32 %v163, 4294901760
    %976 = vmatpush.msra.mxu0 %v975
    %v977 = vand.u32 %v161, 4294901760
    %978 = vmatpush.msra.mxu0 %v977
    %v979 = vand.u32 %v159, 4294901760
    %980 = vmatpush.msra.mxu0 %v979
    %v981 = vand.u32 %v157, 4294901760
    %982 = vmatpush.msra.mxu0 %v981
    %v983 = vand.u32 %v155, 4294901760
    %984 = vmatpush.msra.mxu0 %v983
    %v985 = vand.u32 %v153, 4294901760
    %986 = vmatpush.msra.mxu0 %v985
    %v987 = vand.u32 %v151, 4294901760
    %988 = vmatpush.msra.mxu0 %v987
    %v989 = vand.u32 %v149, 4294901760
    %990 = vmatpush.msra.mxu0 %v989
    %v991 = vand.u32 %v147, 4294901760
    %992 = vmatpush.msra.mxu0 %v991
    %v993 = vand.u32 %v145, 4294901760
    %994 = vmatpush.msra.mxu0 %v993
    %v995 = vand.u32 %v143, 4294901760
    %996 = vmatpush.msra.mxu0 %v995
    %v997 = vand.u32 %v168, 4294901760
    %v998 = vsub.f32 %v168, %v997
    %v999 = vand.u32 %v998, 4294901760
    %v1000 = vsub.f32 %v998, %v999
    %v1001 = vand.u32 %v1000, 4294901760
    %1002 = vmatmul.f32.gmra.mxu0 %v1001
    %v1003 = vpop.f32.mrf.mxu0
    %v1004 = vadd.f32 0.0, %v1003
    %v1005 = vand.u32 %v171, 4294901760
    %v1006 = vsub.f32 %v171, %v1005
    %v1007 = vand.u32 %v1006, 4294901760
    %v1008 = vsub.f32 %v1006, %v1007
    %v1009 = vand.u32 %v1008, 4294901760
    %1010 = vmatmul.f32.gmra.mxu0 %v1009
    %v1011 = vpop.f32.mrf.mxu0
    %v1012 = vadd.f32 0.0, %v1011
    %v1013 = vand.u32 %v174, 4294901760
    %v1014 = vsub.f32 %v174, %v1013
    %v1015 = vand.u32 %v1014, 4294901760
    %v1016 = vsub.f32 %v1014, %v1015
    %v1017 = vand.u32 %v1016, 4294901760
    %1018 = vmatmul.f32.gmra.mxu0 %v1017
    %v1019 = vpop.f32.mrf.mxu0
    %v1020 = vadd.f32 0.0, %v1019
    %v1021 = vand.u32 %v177, 4294901760
    %v1022 = vsub.f32 %v177, %v1021
    %v1023 = vand.u32 %v1022, 4294901760
    %v1024 = vsub.f32 %v1022, %v1023
    %v1025 = vand.u32 %v1024, 4294901760
    %1026 = vmatmul.f32.gmra.mxu0 %v1025
    %v1027 = vpop.f32.mrf.mxu0
    %v1028 = vadd.f32 0.0, %v1027
    %v1029 = vand.u32 %v180, 4294901760
    %v1030 = vsub.f32 %v180, %v1029
    %v1031 = vand.u32 %v1030, 4294901760
    %v1032 = vsub.f32 %v1030, %v1031
    %v1033 = vand.u32 %v1032, 4294901760
    %1034 = vmatmul.f32.gmra.mxu0 %v1033
    %v1035 = vpop.f32.mrf.mxu0
    %v1036 = vadd.f32 0.0, %v1035
    %v1037 = vand.u32 %v183, 4294901760
    %v1038 = vsub.f32 %v183, %v1037
    %v1039 = vand.u32 %v1038, 4294901760
    %v1040 = vsub.f32 %v1038, %v1039
    %v1041 = vand.u32 %v1040, 4294901760
    %1042 = vmatmul.f32.gmra.mxu0 %v1041
    %v1043 = vpop.f32.mrf.mxu0
    %v1044 = vadd.f32 0.0, %v1043
    %v1045 = vand.u32 %v186, 4294901760
    %v1046 = vsub.f32 %v186, %v1045
    %v1047 = vand.u32 %v1046, 4294901760
    %v1048 = vsub.f32 %v1046, %v1047
    %v1049 = vand.u32 %v1048, 4294901760
    %1050 = vmatmul.f32.gmra.mxu0 %v1049
    %v1051 = vpop.f32.mrf.mxu0
    %v1052 = vadd.f32 0.0, %v1051
    %v1053 = vand.u32 %v189, 4294901760
    %v1054 = vsub.f32 %v189, %v1053
    %v1055 = vand.u32 %v1054, 4294901760
    %v1056 = vsub.f32 %v1054, %v1055
    %v1057 = vand.u32 %v1056, 4294901760
    %1058 = vmatmul.f32.gmra.mxu0 %v1057
    %v1059 = vpop.f32.mrf.mxu0
    %v1060 = vadd.f32 0.0, %v1059
    %v1061 = vand.u32 %v192, 4294901760
    %v1062 = vsub.f32 %v192, %v1061
    %v1063 = vand.u32 %v1062, 4294901760
    %v1064 = vsub.f32 %v1062, %v1063
    %v1065 = vand.u32 %v1064, 4294901760
    %1066 = vmatmul.f32.gmra.mxu0 %v1065
    %v1067 = vpop.f32.mrf.mxu0
    %v1068 = vadd.f32 0.0, %v1067
    %v1069 = vand.u32 %v195, 4294901760
    %v1070 = vsub.f32 %v195, %v1069
    %v1071 = vand.u32 %v1070, 4294901760
    %v1072 = vsub.f32 %v1070, %v1071
    %v1073 = vand.u32 %v1072, 4294901760
    %1074 = vmatmul.f32.gmra.mxu0 %v1073
    %v1075 = vpop.f32.mrf.mxu0
    %v1076 = vadd.f32 0.0, %v1075
    %v1077 = vand.u32 %v198, 4294901760
    %v1078 = vsub.f32 %v198, %v1077
    %v1079 = vand.u32 %v1078, 4294901760
    %v1080 = vsub.f32 %v1078, %v1079
    %v1081 = vand.u32 %v1080, 4294901760
    %1082 = vmatmul.f32.gmra.mxu0 %v1081
    %v1083 = vpop.f32.mrf.mxu0
    %v1084 = vadd.f32 0.0, %v1083
    %v1085 = vand.u32 %v201, 4294901760
    %v1086 = vsub.f32 %v201, %v1085
    %v1087 = vand.u32 %v1086, 4294901760
    %v1088 = vsub.f32 %v1086, %v1087
    %v1089 = vand.u32 %v1088, 4294901760
    %1090 = vmatmul.f32.gmra.mxu0 %v1089
    %v1091 = vpop.f32.mrf.mxu0
    %v1092 = vadd.f32 0.0, %v1091
    %v1093 = vand.u32 %v204, 4294901760
    %v1094 = vsub.f32 %v204, %v1093
    %v1095 = vand.u32 %v1094, 4294901760
    %v1096 = vsub.f32 %v1094, %v1095
    %v1097 = vand.u32 %v1096, 4294901760
    %1098 = vmatmul.f32.gmra.mxu0 %v1097
    %v1099 = vpop.f32.mrf.mxu0
    %v1100 = vadd.f32 0.0, %v1099
    %v1101 = vand.u32 %v207, 4294901760
    %v1102 = vsub.f32 %v207, %v1101
    %v1103 = vand.u32 %v1102, 4294901760
    %v1104 = vsub.f32 %v1102, %v1103
    %v1105 = vand.u32 %v1104, 4294901760
    %1106 = vmatmul.f32.gmra.mxu0 %v1105
    %v1107 = vpop.f32.mrf.mxu0
    %v1108 = vadd.f32 0.0, %v1107
    %v1109 = vand.u32 %v210, 4294901760
    %v1110 = vsub.f32 %v210, %v1109
    %v1111 = vand.u32 %v1110, 4294901760
    %v1112 = vsub.f32 %v1110, %v1111
    %v1113 = vand.u32 %v1112, 4294901760
    %1114 = vmatmul.f32.gmra.mxu0 %v1113
    %v1115 = vpop.f32.mrf.mxu0
    %v1116 = vadd.f32 0.0, %v1115
    %v1117 = vand.u32 %v213, 4294901760
    %v1118 = vsub.f32 %v213, %v1117
    %v1119 = vand.u32 %v1118, 4294901760
    %v1120 = vsub.f32 %v1118, %v1119
    %v1121 = vand.u32 %v1120, 4294901760
    %1122 = vmatmul.f32.gmra.mxu0 %v1121
    %v1123 = vpop.f32.mrf.mxu0
    %v1124 = vadd.f32 0.0, %v1123
    %1125 = vdwg.mxu0
    %1126 = vmatpush.msra.mxu0 0.0
    %1127 = vmatpush.msra.mxu0 0.0
    %1128 = vmatpush.msra.mxu0 0.0
    %1129 = vmatpush.msra.mxu0 0.0
    %v1130 = vand.u32 %v165, 4294901760
    %v1131 = vsub.f32 %v165, %v1130
    %v1132 = vand.u32 %v1131, 4294901760
    %v1133 = vsub.f32 %v1131, %v1132
    %v1134 = vand.u32 %v1133, 4294901760
    %1135 = vmatpush.msra.mxu0 %v1134
    %v1136 = vand.u32 %v163, 4294901760
    %v1137 = vsub.f32 %v163, %v1136
    %v1138 = vand.u32 %v1137, 4294901760
    %v1139 = vsub.f32 %v1137, %v1138
    %v1140 = vand.u32 %v1139, 4294901760
    %1141 = vmatpush.msra.mxu0 %v1140
    %v1142 = vand.u32 %v161, 4294901760
    %v1143 = vsub.f32 %v161, %v1142
    %v1144 = vand.u32 %v1143, 4294901760
    %v1145 = vsub.f32 %v1143, %v1144
    %v1146 = vand.u32 %v1145, 4294901760
    %1147 = vmatpush.msra.mxu0 %v1146
    %v1148 = vand.u32 %v159, 4294901760
    %v1149 = vsub.f32 %v159, %v1148
    %v1150 = vand.u32 %v1149, 4294901760
    %v1151 = vsub.f32 %v1149, %v1150
    %v1152 = vand.u32 %v1151, 4294901760
    %1153 = vmatpush.msra.mxu0 %v1152
    %v1154 = vand.u32 %v157, 4294901760
    %v1155 = vsub.f32 %v157, %v1154
    %v1156 = vand.u32 %v1155, 4294901760
    %v1157 = vsub.f32 %v1155, %v1156
    %v1158 = vand.u32 %v1157, 4294901760
    %1159 = vmatpush.msra.mxu0 %v1158
    %v1160 = vand.u32 %v155, 4294901760
    %v1161 = vsub.f32 %v155, %v1160
    %v1162 = vand.u32 %v1161, 4294901760
    %v1163 = vsub.f32 %v1161, %v1162
    %v1164 = vand.u32 %v1163, 4294901760
    %1165 = vmatpush.msra.mxu0 %v1164
    %v1166 = vand.u32 %v153, 4294901760
    %v1167 = vsub.f32 %v153, %v1166
    %v1168 = vand.u32 %v1167, 4294901760
    %v1169 = vsub.f32 %v1167, %v1168
    %v1170 = vand.u32 %v1169, 4294901760
    %1171 = vmatpush.msra.mxu0 %v1170
    %v1172 = vand.u32 %v151, 4294901760
    %v1173 = vsub.f32 %v151, %v1172
    %v1174 = vand.u32 %v1173, 4294901760
    %v1175 = vsub.f32 %v1173, %v1174
    %v1176 = vand.u32 %v1175, 4294901760
    %1177 = vmatpush.msra.mxu0 %v1176
    %v1178 = vand.u32 %v149, 4294901760
    %v1179 = vsub.f32 %v149, %v1178
    %v1180 = vand.u32 %v1179, 4294901760
    %v1181 = vsub.f32 %v1179, %v1180
    %v1182 = vand.u32 %v1181, 4294901760
    %1183 = vmatpush.msra.mxu0 %v1182
    %v1184 = vand.u32 %v147, 4294901760
    %v1185 = vsub.f32 %v147, %v1184
    %v1186 = vand.u32 %v1185, 4294901760
    %v1187 = vsub.f32 %v1185, %v1186
    %v1188 = vand.u32 %v1187, 4294901760
    %1189 = vmatpush.msra.mxu0 %v1188
    %v1190 = vand.u32 %v145, 4294901760
    %v1191 = vsub.f32 %v145, %v1190
    %v1192 = vand.u32 %v1191, 4294901760
    %v1193 = vsub.f32 %v1191, %v1192
    %v1194 = vand.u32 %v1193, 4294901760
    %1195 = vmatpush.msra.mxu0 %v1194
    %v1196 = vand.u32 %v143, 4294901760
    %v1197 = vsub.f32 %v143, %v1196
    %v1198 = vand.u32 %v1197, 4294901760
    %v1199 = vsub.f32 %v1197, %v1198
    %v1200 = vand.u32 %v1199, 4294901760
    %1201 = vmatpush.msra.mxu0 %v1200
    %v1202 = vand.u32 %v168, 4294901760
    %1203 = vmatmul.f32.gmra.mxu0 %v1202
    %v1204 = vpop.f32.mrf.mxu0
    %v1205 = vadd.f32 %v1004, %v1204
    %v1206 = vand.u32 %v171, 4294901760
    %1207 = vmatmul.f32.gmra.mxu0 %v1206
    %v1208 = vpop.f32.mrf.mxu0
    %v1209 = vadd.f32 %v1012, %v1208
    %v1210 = vand.u32 %v174, 4294901760
    %1211 = vmatmul.f32.gmra.mxu0 %v1210
    %v1212 = vpop.f32.mrf.mxu0
    %v1213 = vadd.f32 %v1020, %v1212
    %v1214 = vand.u32 %v177, 4294901760
    %1215 = vmatmul.f32.gmra.mxu0 %v1214
    %v1216 = vpop.f32.mrf.mxu0
    %v1217 = vadd.f32 %v1028, %v1216
    %v1218 = vand.u32 %v180, 4294901760
    %1219 = vmatmul.f32.gmra.mxu0 %v1218
    %v1220 = vpop.f32.mrf.mxu0
    %v1221 = vadd.f32 %v1036, %v1220
    %v1222 = vand.u32 %v183, 4294901760
    %1223 = vmatmul.f32.gmra.mxu0 %v1222
    %v1224 = vpop.f32.mrf.mxu0
    %v1225 = vadd.f32 %v1044, %v1224
    %v1226 = vand.u32 %v186, 4294901760
    %1227 = vmatmul.f32.gmra.mxu0 %v1226
    %v1228 = vpop.f32.mrf.mxu0
    %v1229 = vadd.f32 %v1052, %v1228
    %v1230 = vand.u32 %v189, 4294901760
    %1231 = vmatmul.f32.gmra.mxu0 %v1230
    %v1232 = vpop.f32.mrf.mxu0
    %v1233 = vadd.f32 %v1060, %v1232
    %v1234 = vand.u32 %v192, 4294901760
    %1235 = vmatmul.f32.gmra.mxu0 %v1234
    %v1236 = vpop.f32.mrf.mxu0
    %v1237 = vadd.f32 %v1068, %v1236
    %v1238 = vand.u32 %v195, 4294901760
    %1239 = vmatmul.f32.gmra.mxu0 %v1238
    %v1240 = vpop.f32.mrf.mxu0
    %v1241 = vadd.f32 %v1076, %v1240
    %v1242 = vand.u32 %v198, 4294901760
    %1243 = vmatmul.f32.gmra.mxu0 %v1242
    %v1244 = vpop.f32.mrf.mxu0
    %v1245 = vadd.f32 %v1084, %v1244
    %v1246 = vand.u32 %v201, 4294901760
    %1247 = vmatmul.f32.gmra.mxu0 %v1246
    %v1248 = vpop.f32.mrf.mxu0
    %v1249 = vadd.f32 %v1092, %v1248
    %v1250 = vand.u32 %v204, 4294901760
    %1251 = vmatmul.f32.gmra.mxu0 %v1250
    %v1252 = vpop.f32.mrf.mxu0
    %v1253 = vadd.f32 %v1100, %v1252
    %v1254 = vand.u32 %v207, 4294901760
    %1255 = vmatmul.f32.gmra.mxu0 %v1254
    %v1256 = vpop.f32.mrf.mxu0
    %v1257 = vadd.f32 %v1108, %v1256
    %v1258 = vand.u32 %v210, 4294901760
    %1259 = vmatmul.f32.gmra.mxu0 %v1258
    %v1260 = vpop.f32.mrf.mxu0
    %v1261 = vadd.f32 %v1116, %v1260
    %v1262 = vand.u32 %v213, 4294901760
    %1263 = vmatmul.f32.gmra.mxu0 %v1262
    %v1264 = vpop.f32.mrf.mxu0
    %v1265 = vadd.f32 %v1124, %v1264
    %1266 = vdwg.mxu0
    %1267 = vmatpush.msra.mxu0 0.0
    %1268 = vmatpush.msra.mxu0 0.0
    %1269 = vmatpush.msra.mxu0 0.0
    %1270 = vmatpush.msra.mxu0 0.0
    %v1271 = vand.u32 %v165, 4294901760
    %v1272 = vsub.f32 %v165, %v1271
    %1273 = vmatpush.msra.mxu0 %v1272
    %v1274 = vand.u32 %v163, 4294901760
    %v1275 = vsub.f32 %v163, %v1274
    %1276 = vmatpush.msra.mxu0 %v1275
    %v1277 = vand.u32 %v161, 4294901760
    %v1278 = vsub.f32 %v161, %v1277
    %1279 = vmatpush.msra.mxu0 %v1278
    %v1280 = vand.u32 %v159, 4294901760
    %v1281 = vsub.f32 %v159, %v1280
    %1282 = vmatpush.msra.mxu0 %v1281
    %v1283 = vand.u32 %v157, 4294901760
    %v1284 = vsub.f32 %v157, %v1283
    %1285 = vmatpush.msra.mxu0 %v1284
    %v1286 = vand.u32 %v155, 4294901760
    %v1287 = vsub.f32 %v155, %v1286
    %1288 = vmatpush.msra.mxu0 %v1287
    %v1289 = vand.u32 %v153, 4294901760
    %v1290 = vsub.f32 %v153, %v1289
    %1291 = vmatpush.msra.mxu0 %v1290
    %v1292 = vand.u32 %v151, 4294901760
    %v1293 = vsub.f32 %v151, %v1292
    %1294 = vmatpush.msra.mxu0 %v1293
    %v1295 = vand.u32 %v149, 4294901760
    %v1296 = vsub.f32 %v149, %v1295
    %1297 = vmatpush.msra.mxu0 %v1296
    %v1298 = vand.u32 %v147, 4294901760
    %v1299 = vsub.f32 %v147, %v1298
    %1300 = vmatpush.msra.mxu0 %v1299
    %v1301 = vand.u32 %v145, 4294901760
    %v1302 = vsub.f32 %v145, %v1301
    %1303 = vmatpush.msra.mxu0 %v1302
    %v1304 = vand.u32 %v143, 4294901760
    %v1305 = vsub.f32 %v143, %v1304
    %1306 = vmatpush.msra.mxu0 %v1305
    %v1307 = vand.u32 %v168, 4294901760
    %v1308 = vsub.f32 %v168, %v1307
    %1309 = vmatmul.f32.gmra.mxu0 %v1308
    %v1310 = vpop.f32.mrf.mxu0
    %v1311 = vadd.f32 %v1205, %v1310
    %v1312 = vand.u32 %v171, 4294901760
    %v1313 = vsub.f32 %v171, %v1312
    %1314 = vmatmul.f32.gmra.mxu0 %v1313
    %v1315 = vpop.f32.mrf.mxu0
    %v1316 = vadd.f32 %v1209, %v1315
    %v1317 = vand.u32 %v174, 4294901760
    %v1318 = vsub.f32 %v174, %v1317
    %1319 = vmatmul.f32.gmra.mxu0 %v1318
    %v1320 = vpop.f32.mrf.mxu0
    %v1321 = vadd.f32 %v1213, %v1320
    %v1322 = vand.u32 %v177, 4294901760
    %v1323 = vsub.f32 %v177, %v1322
    %1324 = vmatmul.f32.gmra.mxu0 %v1323
    %v1325 = vpop.f32.mrf.mxu0
    %v1326 = vadd.f32 %v1217, %v1325
    %v1327 = vand.u32 %v180, 4294901760
    %v1328 = vsub.f32 %v180, %v1327
    %1329 = vmatmul.f32.gmra.mxu0 %v1328
    %v1330 = vpop.f32.mrf.mxu0
    %v1331 = vadd.f32 %v1221, %v1330
    %v1332 = vand.u32 %v183, 4294901760
    %v1333 = vsub.f32 %v183, %v1332
    %1334 = vmatmul.f32.gmra.mxu0 %v1333
    %v1335 = vpop.f32.mrf.mxu0
    %v1336 = vadd.f32 %v1225, %v1335
    %v1337 = vand.u32 %v186, 4294901760
    %v1338 = vsub.f32 %v186, %v1337
    %1339 = vmatmul.f32.gmra.mxu0 %v1338
    %v1340 = vpop.f32.mrf.mxu0
    %v1341 = vadd.f32 %v1229, %v1340
    %v1342 = vand.u32 %v189, 4294901760
    %v1343 = vsub.f32 %v189, %v1342
    %1344 = vmatmul.f32.gmra.mxu0 %v1343
    %v1345 = vpop.f32.mrf.mxu0
    %v1346 = vadd.f32 %v1233, %v1345
    %v1347 = vand.u32 %v192, 4294901760
    %v1348 = vsub.f32 %v192, %v1347
    %1349 = vmatmul.f32.gmra.mxu0 %v1348
    %v1350 = vpop.f32.mrf.mxu0
    %v1351 = vadd.f32 %v1237, %v1350
    %v1352 = vand.u32 %v195, 4294901760
    %v1353 = vsub.f32 %v195, %v1352
    %1354 = vmatmul.f32.gmra.mxu0 %v1353
    %v1355 = vpop.f32.mrf.mxu0
    %v1356 = vadd.f32 %v1241, %v1355
    %v1357 = vand.u32 %v198, 4294901760
    %v1358 = vsub.f32 %v198, %v1357
    %1359 = vmatmul.f32.gmra.mxu0 %v1358
    %v1360 = vpop.f32.mrf.mxu0
    %v1361 = vadd.f32 %v1245, %v1360
    %v1362 = vand.u32 %v201, 4294901760
    %v1363 = vsub.f32 %v201, %v1362
    %1364 = vmatmul.f32.gmra.mxu0 %v1363
    %v1365 = vpop.f32.mrf.mxu0
    %v1366 = vadd.f32 %v1249, %v1365
    %v1367 = vand.u32 %v204, 4294901760
    %v1368 = vsub.f32 %v204, %v1367
    %1369 = vmatmul.f32.gmra.mxu0 %v1368
    %v1370 = vpop.f32.mrf.mxu0
    %v1371 = vadd.f32 %v1253, %v1370
    %v1372 = vand.u32 %v207, 4294901760
    %v1373 = vsub.f32 %v207, %v1372
    %1374 = vmatmul.f32.gmra.mxu0 %v1373
    %v1375 = vpop.f32.mrf.mxu0
    %v1376 = vadd.f32 %v1257, %v1375
    %v1377 = vand.u32 %v210, 4294901760
    %v1378 = vsub.f32 %v210, %v1377
    %1379 = vmatmul.f32.gmra.mxu0 %v1378
    %v1380 = vpop.f32.mrf.mxu0
    %v1381 = vadd.f32 %v1261, %v1380
    %v1382 = vand.u32 %v213, 4294901760
    %v1383 = vsub.f32 %v213, %v1382
    %1384 = vmatmul.f32.gmra.mxu0 %v1383
    %v1385 = vpop.f32.mrf.mxu0
    %v1386 = vadd.f32 %v1265, %v1385
    %1387 = vdwg.mxu0
    %1388 = vmatpush.msra.mxu0 0.0
    %1389 = vmatpush.msra.mxu0 0.0
    %1390 = vmatpush.msra.mxu0 0.0
    %1391 = vmatpush.msra.mxu0 0.0
    %v1392 = vand.u32 %v165, 4294901760
    %1393 = vmatpush.msra.mxu0 %v1392
    %v1394 = vand.u32 %v163, 4294901760
    %1395 = vmatpush.msra.mxu0 %v1394
    %v1396 = vand.u32 %v161, 4294901760
    %1397 = vmatpush.msra.mxu0 %v1396
    %v1398 = vand.u32 %v159, 4294901760
    %1399 = vmatpush.msra.mxu0 %v1398
    %v1400 = vand.u32 %v157, 4294901760
    %1401 = vmatpush.msra.mxu0 %v1400
    %v1402 = vand.u32 %v155, 4294901760
    %1403 = vmatpush.msra.mxu0 %v1402
    %v1404 = vand.u32 %v153, 4294901760
    %1405 = vmatpush.msra.mxu0 %v1404
    %v1406 = vand.u32 %v151, 4294901760
    %1407 = vmatpush.msra.mxu0 %v1406
    %v1408 = vand.u32 %v149, 4294901760
    %1409 = vmatpush.msra.mxu0 %v1408
    %v1410 = vand.u32 %v147, 4294901760
    %1411 = vmatpush.msra.mxu0 %v1410
    %v1412 = vand.u32 %v145, 4294901760
    %1413 = vmatpush.msra.mxu0 %v1412
    %v1414 = vand.u32 %v143, 4294901760
    %1415 = vmatpush.msra.mxu0 %v1414
    %v1416 = vand.u32 %v168, 4294901760
    %v1417 = vsub.f32 %v168, %v1416
    %v1418 = vand.u32 %v1417, 4294901760
    %1419 = vmatmul.f32.gmra.mxu0 %v1418
    %v1420 = vpop.f32.mrf.mxu0
    %v1421 = vadd.f32 %v1311, %v1420
    %v1422 = vand.u32 %v171, 4294901760
    %v1423 = vsub.f32 %v171, %v1422
    %v1424 = vand.u32 %v1423, 4294901760
    %1425 = vmatmul.f32.gmra.mxu0 %v1424
    %v1426 = vpop.f32.mrf.mxu0
    %v1427 = vadd.f32 %v1316, %v1426
    %v1428 = vand.u32 %v174, 4294901760
    %v1429 = vsub.f32 %v174, %v1428
    %v1430 = vand.u32 %v1429, 4294901760
    %1431 = vmatmul.f32.gmra.mxu0 %v1430
    %v1432 = vpop.f32.mrf.mxu0
    %v1433 = vadd.f32 %v1321, %v1432
    %v1434 = vand.u32 %v177, 4294901760
    %v1435 = vsub.f32 %v177, %v1434
    %v1436 = vand.u32 %v1435, 4294901760
    %1437 = vmatmul.f32.gmra.mxu0 %v1436
    %v1438 = vpop.f32.mrf.mxu0
    %v1439 = vadd.f32 %v1326, %v1438
    %v1440 = vand.u32 %v180, 4294901760
    %v1441 = vsub.f32 %v180, %v1440
    %v1442 = vand.u32 %v1441, 4294901760
    %1443 = vmatmul.f32.gmra.mxu0 %v1442
    %v1444 = vpop.f32.mrf.mxu0
    %v1445 = vadd.f32 %v1331, %v1444
    %v1446 = vand.u32 %v183, 4294901760
    %v1447 = vsub.f32 %v183, %v1446
    %v1448 = vand.u32 %v1447, 4294901760
    %1449 = vmatmul.f32.gmra.mxu0 %v1448
    %v1450 = vpop.f32.mrf.mxu0
    %v1451 = vadd.f32 %v1336, %v1450
    %v1452 = vand.u32 %v186, 4294901760
    %v1453 = vsub.f32 %v186, %v1452
    %v1454 = vand.u32 %v1453, 4294901760
    %1455 = vmatmul.f32.gmra.mxu0 %v1454
    %v1456 = vpop.f32.mrf.mxu0
    %v1457 = vadd.f32 %v1341, %v1456
    %v1458 = vand.u32 %v189, 4294901760
    %v1459 = vsub.f32 %v189, %v1458
    %v1460 = vand.u32 %v1459, 4294901760
    %1461 = vmatmul.f32.gmra.mxu0 %v1460
    %v1462 = vpop.f32.mrf.mxu0
    %v1463 = vadd.f32 %v1346, %v1462
    %v1464 = vand.u32 %v192, 4294901760
    %v1465 = vsub.f32 %v192, %v1464
    %v1466 = vand.u32 %v1465, 4294901760
    %1467 = vmatmul.f32.gmra.mxu0 %v1466
    %v1468 = vpop.f32.mrf.mxu0
    %v1469 = vadd.f32 %v1351, %v1468
    %v1470 = vand.u32 %v195, 4294901760
    %v1471 = vsub.f32 %v195, %v1470
    %v1472 = vand.u32 %v1471, 4294901760
    %1473 = vmatmul.f32.gmra.mxu0 %v1472
    %v1474 = vpop.f32.mrf.mxu0
    %v1475 = vadd.f32 %v1356, %v1474
    %v1476 = vand.u32 %v198, 4294901760
    %v1477 = vsub.f32 %v198, %v1476
    %v1478 = vand.u32 %v1477, 4294901760
    %1479 = vmatmul.f32.gmra.mxu0 %v1478
    %v1480 = vpop.f32.mrf.mxu0
    %v1481 = vadd.f32 %v1361, %v1480
    %v1482 = vand.u32 %v201, 4294901760
    %v1483 = vsub.f32 %v201, %v1482
    %v1484 = vand.u32 %v1483, 4294901760
    %1485 = vmatmul.f32.gmra.mxu0 %v1484
    %v1486 = vpop.f32.mrf.mxu0
    %v1487 = vadd.f32 %v1366, %v1486
    %v1488 = vand.u32 %v204, 4294901760
    %v1489 = vsub.f32 %v204, %v1488
    %v1490 = vand.u32 %v1489, 4294901760
    %1491 = vmatmul.f32.gmra.mxu0 %v1490
    %v1492 = vpop.f32.mrf.mxu0
    %v1493 = vadd.f32 %v1371, %v1492
    %v1494 = vand.u32 %v207, 4294901760
    %v1495 = vsub.f32 %v207, %v1494
    %v1496 = vand.u32 %v1495, 4294901760
    %1497 = vmatmul.f32.gmra.mxu0 %v1496
    %v1498 = vpop.f32.mrf.mxu0
    %v1499 = vadd.f32 %v1376, %v1498
    %v1500 = vand.u32 %v210, 4294901760
    %v1501 = vsub.f32 %v210, %v1500
    %v1502 = vand.u32 %v1501, 4294901760
    %1503 = vmatmul.f32.gmra.mxu0 %v1502
    %v1504 = vpop.f32.mrf.mxu0
    %v1505 = vadd.f32 %v1381, %v1504
    %v1506 = vand.u32 %v213, 4294901760
    %v1507 = vsub.f32 %v213, %v1506
    %v1508 = vand.u32 %v1507, 4294901760
    %1509 = vmatmul.f32.gmra.mxu0 %v1508
    %v1510 = vpop.f32.mrf.mxu0
    %v1511 = vadd.f32 %v1386, %v1510
    %1512 = vdwg.mxu0
    %1513 = vmatpush.msra.mxu0 0.0
    %1514 = vmatpush.msra.mxu0 0.0
    %1515 = vmatpush.msra.mxu0 0.0
    %1516 = vmatpush.msra.mxu0 0.0
    %v1517 = vand.u32 %v165, 4294901760
    %v1518 = vsub.f32 %v165, %v1517
    %v1519 = vand.u32 %v1518, 4294901760
    %1520 = vmatpush.msra.mxu0 %v1519
    %v1521 = vand.u32 %v163, 4294901760
    %v1522 = vsub.f32 %v163, %v1521
    %v1523 = vand.u32 %v1522, 4294901760
    %1524 = vmatpush.msra.mxu0 %v1523
    %v1525 = vand.u32 %v161, 4294901760
    %v1526 = vsub.f32 %v161, %v1525
    %v1527 = vand.u32 %v1526, 4294901760
    %1528 = vmatpush.msra.mxu0 %v1527
    %v1529 = vand.u32 %v159, 4294901760
    %v1530 = vsub.f32 %v159, %v1529
    %v1531 = vand.u32 %v1530, 4294901760
    %1532 = vmatpush.msra.mxu0 %v1531
    %v1533 = vand.u32 %v157, 4294901760
    %v1534 = vsub.f32 %v157, %v1533
    %v1535 = vand.u32 %v1534, 4294901760
    %1536 = vmatpush.msra.mxu0 %v1535
    %v1537 = vand.u32 %v155, 4294901760
    %v1538 = vsub.f32 %v155, %v1537
    %v1539 = vand.u32 %v1538, 4294901760
    %1540 = vmatpush.msra.mxu0 %v1539
    %v1541 = vand.u32 %v153, 4294901760
    %v1542 = vsub.f32 %v153, %v1541
    %v1543 = vand.u32 %v1542, 4294901760
    %1544 = vmatpush.msra.mxu0 %v1543
    %v1545 = vand.u32 %v151, 4294901760
    %v1546 = vsub.f32 %v151, %v1545
    %v1547 = vand.u32 %v1546, 4294901760
    %1548 = vmatpush.msra.mxu0 %v1547
    %v1549 = vand.u32 %v149, 4294901760
    %v1550 = vsub.f32 %v149, %v1549
    %v1551 = vand.u32 %v1550, 4294901760
    %1552 = vmatpush.msra.mxu0 %v1551
    %v1553 = vand.u32 %v147, 4294901760
    %v1554 = vsub.f32 %v147, %v1553
    %v1555 = vand.u32 %v1554, 4294901760
    %1556 = vmatpush.msra.mxu0 %v1555
    %v1557 = vand.u32 %v145, 4294901760
    %v1558 = vsub.f32 %v145, %v1557
    %v1559 = vand.u32 %v1558, 4294901760
    %1560 = vmatpush.msra.mxu0 %v1559
    %v1561 = vand.u32 %v143, 4294901760
    %v1562 = vsub.f32 %v143, %v1561
    %v1563 = vand.u32 %v1562, 4294901760
    %1564 = vmatpush.msra.mxu0 %v1563
    %v1565 = vand.u32 %v168, 4294901760
    %1566 = vmatmul.f32.gmra.mxu0 %v1565
    %v1567 = vpop.f32.mrf.mxu0
    %v1568 = vadd.f32 %v1421, %v1567
    %v1569 = vand.u32 %v171, 4294901760
    %1570 = vmatmul.f32.gmra.mxu0 %v1569
    %v1571 = vpop.f32.mrf.mxu0
    %v1572 = vadd.f32 %v1427, %v1571
    %v1573 = vand.u32 %v174, 4294901760
    %1574 = vmatmul.f32.gmra.mxu0 %v1573
    %v1575 = vpop.f32.mrf.mxu0
    %v1576 = vadd.f32 %v1433, %v1575
    %v1577 = vand.u32 %v177, 4294901760
    %1578 = vmatmul.f32.gmra.mxu0 %v1577
    %v1579 = vpop.f32.mrf.mxu0
    %v1580 = vadd.f32 %v1439, %v1579
    %v1581 = vand.u32 %v180, 4294901760
    %1582 = vmatmul.f32.gmra.mxu0 %v1581
    %v1583 = vpop.f32.mrf.mxu0
    %v1584 = vadd.f32 %v1445, %v1583
    %v1585 = vand.u32 %v183, 4294901760
    %1586 = vmatmul.f32.gmra.mxu0 %v1585
    %v1587 = vpop.f32.mrf.mxu0
    %v1588 = vadd.f32 %v1451, %v1587
    %v1589 = vand.u32 %v186, 4294901760
    %1590 = vmatmul.f32.gmra.mxu0 %v1589
    %v1591 = vpop.f32.mrf.mxu0
    %v1592 = vadd.f32 %v1457, %v1591
    %v1593 = vand.u32 %v189, 4294901760
    %1594 = vmatmul.f32.gmra.mxu0 %v1593
    %v1595 = vpop.f32.mrf.mxu0
    %v1596 = vadd.f32 %v1463, %v1595
    %v1597 = vand.u32 %v192, 4294901760
    %1598 = vmatmul.f32.gmra.mxu0 %v1597
    %v1599 = vpop.f32.mrf.mxu0
    %v1600 = vadd.f32 %v1469, %v1599
    %v1601 = vand.u32 %v195, 4294901760
    %1602 = vmatmul.f32.gmra.mxu0 %v1601
    %v1603 = vpop.f32.mrf.mxu0
    %v1604 = vadd.f32 %v1475, %v1603
    %v1605 = vand.u32 %v198, 4294901760
    %1606 = vmatmul.f32.gmra.mxu0 %v1605
    %v1607 = vpop.f32.mrf.mxu0
    %v1608 = vadd.f32 %v1481, %v1607
    %v1609 = vand.u32 %v201, 4294901760
    %1610 = vmatmul.f32.gmra.mxu0 %v1609
    %v1611 = vpop.f32.mrf.mxu0
    %v1612 = vadd.f32 %v1487, %v1611
    %v1613 = vand.u32 %v204, 4294901760
    %1614 = vmatmul.f32.gmra.mxu0 %v1613
    %v1615 = vpop.f32.mrf.mxu0
    %v1616 = vadd.f32 %v1493, %v1615
    %v1617 = vand.u32 %v207, 4294901760
    %1618 = vmatmul.f32.gmra.mxu0 %v1617
    %v1619 = vpop.f32.mrf.mxu0
    %v1620 = vadd.f32 %v1499, %v1619
    %v1621 = vand.u32 %v210, 4294901760
    %1622 = vmatmul.f32.gmra.mxu0 %v1621
    %v1623 = vpop.f32.mrf.mxu0
    %v1624 = vadd.f32 %v1505, %v1623
    %v1625 = vand.u32 %v213, 4294901760
    %1626 = vmatmul.f32.gmra.mxu0 %v1625
    %v1627 = vpop.f32.mrf.mxu0
    %v1628 = vadd.f32 %v1511, %v1627
    %1629 = vdwg.mxu0
    %1630 = vmatpush.msra.mxu0 0.0
    %1631 = vmatpush.msra.mxu0 0.0
    %1632 = vmatpush.msra.mxu0 0.0
    %1633 = vmatpush.msra.mxu0 0.0
    %v1634 = vand.u32 %v165, 4294901760
    %1635 = vmatpush.msra.mxu0 %v1634
    %v1636 = vand.u32 %v163, 4294901760
    %1637 = vmatpush.msra.mxu0 %v1636
    %v1638 = vand.u32 %v161, 4294901760
    %1639 = vmatpush.msra.mxu0 %v1638
    %v1640 = vand.u32 %v159, 4294901760
    %1641 = vmatpush.msra.mxu0 %v1640
    %v1642 = vand.u32 %v157, 4294901760
    %1643 = vmatpush.msra.mxu0 %v1642
    %v1644 = vand.u32 %v155, 4294901760
    %1645 = vmatpush.msra.mxu0 %v1644
    %v1646 = vand.u32 %v153, 4294901760
    %1647 = vmatpush.msra.mxu0 %v1646
    %v1648 = vand.u32 %v151, 4294901760
    %1649 = vmatpush.msra.mxu0 %v1648
    %v1650 = vand.u32 %v149, 4294901760
    %1651 = vmatpush.msra.mxu0 %v1650
    %v1652 = vand.u32 %v147, 4294901760
    %1653 = vmatpush.msra.mxu0 %v1652
    %v1654 = vand.u32 %v145, 4294901760
    %1655 = vmatpush.msra.mxu0 %v1654
    %v1656 = vand.u32 %v143, 4294901760
    %1657 = vmatpush.msra.mxu0 %v1656
    %v1658 = vand.u32 %v168, 4294901760
    %1659 = vmatmul.f32.gmra.mxu0 %v1658
    %v1660 = vpop.f32.mrf.mxu0
    %v1661 = vadd.f32 %v1568, %v1660
    %v1662 = vand.u32 %v171, 4294901760
    %1663 = vmatmul.f32.gmra.mxu0 %v1662
    %v1664 = vpop.f32.mrf.mxu0
    %v1665 = vadd.f32 %v1572, %v1664
    %v1666 = vand.u32 %v174, 4294901760
    %1667 = vmatmul.f32.gmra.mxu0 %v1666
    %v1668 = vpop.f32.mrf.mxu0
    %v1669 = vadd.f32 %v1576, %v1668
    %v1670 = vand.u32 %v177, 4294901760
    %1671 = vmatmul.f32.gmra.mxu0 %v1670
    %v1672 = vpop.f32.mrf.mxu0
    %v1673 = vadd.f32 %v1580, %v1672
    %v1674 = vand.u32 %v180, 4294901760
    %1675 = vmatmul.f32.gmra.mxu0 %v1674
    %v1676 = vpop.f32.mrf.mxu0
    %v1677 = vadd.f32 %v1584, %v1676
    %v1678 = vand.u32 %v183, 4294901760
    %1679 = vmatmul.f32.gmra.mxu0 %v1678
    %v1680 = vpop.f32.mrf.mxu0
    %v1681 = vadd.f32 %v1588, %v1680
    %v1682 = vand.u32 %v186, 4294901760
    %1683 = vmatmul.f32.gmra.mxu0 %v1682
    %v1684 = vpop.f32.mrf.mxu0
    %v1685 = vadd.f32 %v1592, %v1684
    %v1686 = vand.u32 %v189, 4294901760
    %1687 = vmatmul.f32.gmra.mxu0 %v1686
    %v1688 = vpop.f32.mrf.mxu0
    %v1689 = vadd.f32 %v1596, %v1688
    %v1690 = vand.u32 %v192, 4294901760
    %1691 = vmatmul.f32.gmra.mxu0 %v1690
    %v1692 = vpop.f32.mrf.mxu0
    %v1693 = vadd.f32 %v1600, %v1692
    %v1694 = vand.u32 %v195, 4294901760
    %1695 = vmatmul.f32.gmra.mxu0 %v1694
    %v1696 = vpop.f32.mrf.mxu0
    %v1697 = vadd.f32 %v1604, %v1696
    %v1698 = vand.u32 %v198, 4294901760
    %1699 = vmatmul.f32.gmra.mxu0 %v1698
    %v1700 = vpop.f32.mrf.mxu0
    %v1701 = vadd.f32 %v1608, %v1700
    %v1702 = vand.u32 %v201, 4294901760
    %1703 = vmatmul.f32.gmra.mxu0 %v1702
    %v1704 = vpop.f32.mrf.mxu0
    %v1705 = vadd.f32 %v1612, %v1704
    %v1706 = vand.u32 %v204, 4294901760
    %1707 = vmatmul.f32.gmra.mxu0 %v1706
    %v1708 = vpop.f32.mrf.mxu0
    %v1709 = vadd.f32 %v1616, %v1708
    %v1710 = vand.u32 %v207, 4294901760
    %1711 = vmatmul.f32.gmra.mxu0 %v1710
    %v1712 = vpop.f32.mrf.mxu0
    %v1713 = vadd.f32 %v1620, %v1712
    %v1714 = vand.u32 %v210, 4294901760
    %1715 = vmatmul.f32.gmra.mxu0 %v1714
    %v1716 = vpop.f32.mrf.mxu0
    %v1717 = vadd.f32 %v1624, %v1716
    %v1718 = vand.u32 %v213, 4294901760
    %1719 = vmatmul.f32.gmra.mxu0 %v1718
    %v1720 = vpop.f32.mrf.mxu0
    %v1721 = vadd.f32 %v1628, %v1720
    %1722 = vdwg.mxu0
    %v1723 = vmul.f32 %v907, 16.0
    %v1724 = vmul.f32 %v1661, 16.0
    %v1725 = vmul.f32 %v911, 16.0
    %v1726 = vmul.f32 %v1665, 16.0
    %v1727 = vmul.f32 %v915, 16.0
    %v1728 = vmul.f32 %v1669, 16.0
    %v1729 = vmul.f32 %v919, 16.0
    %v1730 = vmul.f32 %v1673, 16.0
    %v1731 = vmul.f32 %v923, 16.0
    %v1732 = vmul.f32 %v1677, 16.0
    %v1733 = vmul.f32 %v927, 16.0
    %v1734 = vmul.f32 %v1681, 16.0
    %v1735 = vmul.f32 %v931, 16.0
    %v1736 = vmul.f32 %v1685, 16.0
    %v1737 = vmul.f32 %v935, 16.0
    %v1738 = vmul.f32 %v1689, 16.0
    %v1739 = vmul.f32 %v939, 16.0
    %v1740 = vmul.f32 %v1693, 16.0
    %v1741 = vmul.f32 %v943, 16.0
    %v1742 = vmul.f32 %v1697, 16.0
    %v1743 = vmul.f32 %v947, 16.0
    %v1744 = vmul.f32 %v1701, 16.0
    %v1745 = vmul.f32 %v951, 16.0
    %v1746 = vmul.f32 %v1705, 16.0
    %v1747 = vmul.f32 %v955, 16.0
    %v1748 = vmul.f32 %v1709, 16.0
    %v1749 = vmul.f32 %v959, 16.0
    %v1750 = vmul.f32 %v1713, 16.0
    %v1751 = vmul.f32 %v963, 16.0
    %v1752 = vmul.f32 %v1717, 16.0
    %v1753 = vmul.f32 %v967, 16.0
    %v1754 = vmul.f32 %v1721, 16.0
    %1755 = vst [vmem:[#allocation5] sm:$0xff] %v1723
    %1756 = vst [vmem:[#allocation5 + $0x8] sm:$0xff] %v1724
    %1757 = vst [vmem:[#allocation5 + $0x10] sm:$0xff] %v1725
    %1758 = vst [vmem:[#allocation5 + $0x18] sm:$0xff] %v1726
    %1759 = vst [vmem:[#allocation5 + $0x20] sm:$0xff] %v1727
    %1760 = vst [vmem:[#allocation5 + $0x28] sm:$0xff] %v1728
    %1761 = vst [vmem:[#allocation5 + $0x30] sm:$0xff] %v1729
    %1762 = vst [vmem:[#allocation5 + $0x38] sm:$0xff] %v1730
    %1763 = vst [vmem:[#allocation5 + $0x40] sm:$0xff] %v1731
    %1764 = vst [vmem:[#allocation5 + $0x48] sm:$0xff] %v1732
    %1765 = vst [vmem:[#allocation5 + $0x50] sm:$0xff] %v1733
    %1766 = vst [vmem:[#allocation5 + $0x58] sm:$0xff] %v1734
    %1767 = vst [vmem:[#allocation5 + $0x60] sm:$0xff] %v1735
    %1768 = vst [vmem:[#allocation5 + $0x68] sm:$0xff] %v1736
    %1769 = vst [vmem:[#allocation5 + $0x70] sm:$0xff] %v1737
    %1770 = vst [vmem:[#allocation5 + $0x78] sm:$0xff] %v1738
    %1771 = vst [vmem:[#allocation5 + $0x80] sm:$0xff] %v1739
    %1772 = vst [vmem:[#allocation5 + $0x88] sm:$0xff] %v1740
    %1773 = vst [vmem:[#allocation5 + $0x90] sm:$0xff] %v1741
    %1774 = vst [vmem:[#allocation5 + $0x98] sm:$0xff] %v1742
    %1775 = vst [vmem:[#allocation5 + $0xa0] sm:$0xff] %v1743
    %1776 = vst [vmem:[#allocation5 + $0xa8] sm:$0xff] %v1744
    %1777 = vst [vmem:[#allocation5 + $0xb0] sm:$0xff] %v1745
    %1778 = vst [vmem:[#allocation5 + $0xb8] sm:$0xff] %v1746
    %1779 = vst [vmem:[#allocation5 + $0xc0] sm:$0xff] %v1747
    %1780 = vst [vmem:[#allocation5 + $0xc8] sm:$0xff] %v1748
    %1781 = vst [vmem:[#allocation5 + $0xd0] sm:$0xff] %v1749
    %1782 = vst [vmem:[#allocation5 + $0xd8] sm:$0xff] %v1750
    %1783 = vst [vmem:[#allocation5 + $0xe0] sm:$0xff] %v1751
    %1784 = vst [vmem:[#allocation5 + $0xe8] sm:$0xff] %v1752
    %1785 = vst [vmem:[#allocation5 + $0xf0] sm:$0xff] %v1753
    %1786 = vst [vmem:[#allocation5 + $0xf8] sm:$0xff] %v1754
    // Predicated region
    $region14: #{tpu_custom_call.1} parent=1 // pred_check
      _
    $region15: #{tpu_custom_call.1} parent=1 // pred_check_branch
      %1788 = sbr.rel (0) target = $region17
    $region16: #{tpu_custom_call.1} parent=1 // pred_region
      %1790 = vsyncadd [#allocation4], 0
      %s1791 = sshll.u32 [#allocation5], 4
      %s1792 = int_to_ptr.vmem [resolvable:$true] %s1791
      %s1793 = sshll.u32 %s2, 4
      %s1794 = int_to_ptr.hbm [resolvable:$true] %s1793
      %1799 = dma.vmem_to_hbm [thread:$0]  %s1792, 4096, %s1794, [#allocation4], 256, 256, 16
    $region17: #{tpu_custom_call.1} parent=1 // pred_fallthru
      _
    // Predicated region
    $region18: #{tpu_custom_call.1} parent=1 // pred_check
      _
    $region19: #{tpu_custom_call.1} parent=1 // pred_check_branch
      %1801 = sbr.rel (0) target = $region21
    $region20: #{tpu_custom_call.1} parent=1 // pred_region
      %1803 = dma.done [#allocation4], 4096
    $region21: #{tpu_custom_call.1} parent=1 // pred_fallthru
      _
    %1804 = vsyncpa [#allocation3], 1
    %1805 = vsyncpa [#allocation4], 1

</llo_original>
